<compile_context>
chip_gen: v6e
topology: v6e:2x2x1
jax: 0.10.0
libtpu: 0.0.40
codegen_flags: <defaults>
</compile_context>

<pallas_src>
import functools

import jax
import jax.numpy as jnp
from jax.experimental import pallas as pl
from jax.experimental.pallas import tpu as pltpu


# ------------------------------------------------------------- kernel math --

def _bn_relu(h, gamma, beta):
    # nn.BatchNorm1d (training mode): batch mean, *biased* variance, eps=1e-5,
    # affine gamma/beta, then ReLU(inplace=True).  The whole batch lives in one
    # block, so the statistics are exact (never tile the batch axis here).
    mean = jnp.mean(h, axis=0, keepdims=True)
    d = h - mean
    var = jnp.mean(d * d, axis=0, keepdims=True)
    return jnp.maximum(d * jax.lax.rsqrt(var + 1e-5) * gamma + beta, 0.0)


def _mlp_fwd(x, w1, b1, g, beta, w2, b2):
    # MLP(dim, projection_size, hidden): Linear -> BatchNorm1d -> ReLU -> Linear.
    # bf16 operands on the MXU, f32 accumulation; bias/BN/ReLU stay f32.
    h = jnp.dot(x.astype(jnp.bfloat16), w1[...],
                preferred_element_type=jnp.float32) + b1[...]
    h = _bn_relu(h, g[...], beta[...])
    return jnp.dot(h.astype(jnp.bfloat16), w2[...],
                   preferred_element_type=jnp.float32) + b2[...]


def _l2_normalize(v, eps=1e-12):
    # F.normalize: v / max(||v||, eps)  ==  v * rsqrt(max(||v||^2, eps^2))  (EUP).
    nsq = jnp.sum(v * v, axis=-1, keepdims=True)
    return v * jax.lax.rsqrt(jnp.maximum(nsq, eps * eps))


# ----------------------------------------------------------------- kernels --

def _netwrapper_kernel(x_ref, ew_ref, eb_ref,
                       w1_ref, b1_ref, g_ref, beta_ref, w2_ref, b2_ref,
                       proj_ref, rep_ref, acc_ref):
    """NetWrapper.forward: backbone Linear+ReLU -> projector MLP, one launch.

    Grid axis 0 tiles the backbone contraction (K); the matmul accumulates in
    f32 VMEM scratch (pl.when init/finalize).  Bias+ReLU and the projector run
    once in the final K step.
    """
    k = pl.program_id(0)

    @pl.when(k == 0)
    def _():
        acc_ref[...] = jnp.zeros_like(acc_ref)

    acc_ref[...] += jnp.dot(x_ref[...], ew_ref[...],
                            preferred_element_type=jnp.float32)

    @pl.when(k == pl.num_programs(0) - 1)
    def _():
        rep = jnp.maximum(acc_ref[...] + eb_ref[...], 0.0)
        rep_ref[...] = rep
        proj_ref[...] = _mlp_fwd(rep, w1_ref, b1_ref, g_ref, beta_ref,
                                 w2_ref, b2_ref)


def _byol_kernel(x_ref, ew_ref, eb_ref,
                 ow1, ob1, og, obt, ow2, ob2,      # online projector
                 tw1, tb1, tg, tbt, tw2, tb2,      # target projector
                 pw1, pb1, pg, pbt, pw2, pb2,      # online predictor
                 loss_ref, acc_ref):
    """Fully fused BYOL forward: dual backbone (N-concat) -> two projectors ->
    predictor -> cosine loss, one launch."""
    k = pl.program_id(0)

    @pl.when(k == 0)
    def _():
        acc_ref[...] = jnp.zeros_like(acc_ref)

    # x (B, tk) bf16  @  [enc_w_online || enc_w_target] (tk, 2R) bf16 -> f32 acc.
    acc_ref[...] += jnp.dot(x_ref[...], ew_ref[...],
                            preferred_element_type=jnp.float32)

    @pl.when(k == pl.num_programs(0) - 1)
    def _():
        R = acc_ref.shape[1] // 2
        rep = jnp.maximum(acc_ref[...] + eb_ref[...], 0.0)            # (B, 2R)
        proj_on = _mlp_fwd(rep[:, :R], ow1, ob1, og, obt, ow2, ob2)
        # target branch is under torch.no_grad() in the reference; forward-only
        # here, so no stop_gradient is needed inside the kernel.
        proj_tg = _mlp_fwd(rep[:, R:], tw1, tb1, tg, tbt, tw2, tb2)
        pred = _mlp_fwd(proj_on, pw1, pb1, pg, pbt, pw2, pb2)

        p = _l2_normalize(pred)
        t = _l2_normalize(proj_tg)
        loss_one = 2.0 - 2.0 * jnp.sum(p * t, axis=-1, keepdims=True)  # (B, 1)
        # anchors == positives ('agent' data type, identity augments) =>
        # (loss_one + loss_two).mean() == 2 * loss_one.mean()
        total = 2.0 * jnp.sum(loss_one) / loss_one.shape[0]
        loss_ref[...] = jnp.zeros((1, 1), jnp.float32) + total


# ----------------------------------------------------------------- helpers --

def _round_up(x, m):
    return (x + m - 1) // m * m


def _vmem_limit_bytes():
    # Per-generation VMEM budget: ~75% of per-core VMEM, capped at 100 MiB.
    # v7x: 64 MiB -> 48 MiB; v5e/v6e: 128 MiB -> 96 MiB.
    cap = 128 << 20
    try:
        cap = int(getattr(pltpu.get_tpu_info(), "vmem_capacity_bytes", cap) or cap)
    except Exception:
        pass
    return min(cap * 3 // 4, 100 << 20)


def _const_spec(shape):
    return pl.BlockSpec(shape, lambda k, _s=len(shape): (0,) * _s)


def _mlp_specs(d_in, d_hid, d_out):
    return [_const_spec((d_in, d_hid)), _const_spec((1, d_hid)),
            _const_spec((1, d_hid)), _const_spec((1, d_hid)),
            _const_spec((d_hid, d_out)), _const_spec((1, d_out))]


def _mlp_operands(p, prefix):
    return (p[prefix + "w1"].astype(jnp.bfloat16), p[prefix + "b1"],
            p[prefix + "g"], p[prefix + "beta"],
            p[prefix + "w2"].astype(jnp.bfloat16), p[prefix + "b2"])


def _tile_k(x2d, enc_w, tk):
    """Pick the K tile (multiple of 256, clamped) and zero-pad K if needed."""
    in_dim = x2d.shape[1]
    tk = min(tk, _round_up(in_dim, 256))
    k_pad = _round_up(in_dim, tk)
    if k_pad != in_dim:                         # zero-pad K: no effect on the dot
        x2d = jnp.pad(x2d, ((0, 0), (0, k_pad - in_dim)))
        enc_w = jnp.pad(enc_w, ((0, k_pad - in_dim), (0, 0)))
    return x2d, enc_w, tk, k_pad // tk


# ---------------------------------------------------------------- wrappers --

@functools.partial(jax.jit, static_argnames=("tk",))
def netwrapper_forward(enc_params, x, *, tk=2048):
    """NetWrapper.forward(x) -> (projection, representation), one pallas_call."""
    B = x.shape[0]
    x2d = x.reshape(B, -1).astype(jnp.bfloat16)     # bf16 DMA; f32 accumulation
    enc_w = enc_params["enc_w"].astype(jnp.bfloat16)
    R = enc_w.shape[1]
    Hd = enc_params["proj_w1"].shape[1]
    P = enc_params["proj_w2"].shape[1]
    x2d, enc_w, tk, nk = _tile_k(x2d, enc_w, tk)

    grid_spec = pltpu.PrefetchScalarGridSpec(
        num_scalar_prefetch=0,
        grid=(nk,),
        in_specs=[
            pl.BlockSpec((B, tk), lambda k: (0, k)),      # x      (bf16, K-tiled)
            pl.BlockSpec((tk, R), lambda k: (k, 0)),      # enc_w  (bf16, K-tiled)
            _const_spec((1, R)),                          # enc_b
        ] + _mlp_specs(R, Hd, P),                         # projector params
        out_specs=[_const_spec((B, P)), _const_spec((B, R))],
        scratch_shapes=[pltpu.VMEM((B, R), jnp.float32)],
    )
    proj, rep = pl.pallas_call(
        _netwrapper_kernel,
        out_shape=(jax.ShapeDtypeStruct((B, P), jnp.float32),
                   jax.ShapeDtypeStruct((B, R), jnp.float32)),
        grid_spec=grid_spec,
        compiler_params=pltpu.CompilerParams(
            dimension_semantics=("arbitrary",),           # K is a reduction axis
            vmem_limit_bytes=_vmem_limit_bytes()),
    )(x2d, enc_w, enc_params["enc_b"], *_mlp_operands(enc_params, "proj_"))
    return proj, rep


@functools.partial(jax.jit, static_argnames=("tk",))
def byol_forward(params, obs, *, tk=2048):
    """Fused BYOL forward (CL_data_type='agent', identity augments) -> scalar loss."""
    online, target, predictor = params["online"], params["target"], params["predictor"]
    B = obs.shape[0]
    x2d = obs.reshape(B, -1).astype(jnp.bfloat16)

    R = online["enc_w"].shape[1]
    Hd = online["proj_w1"].shape[1]
    P = online["proj_w2"].shape[1]

    # Fuse online || target backbones along N: one x DMA, one K loop, MXU N = 2R.
    enc_w = jnp.concatenate([online["enc_w"], target["enc_w"]],
                            axis=1).astype(jnp.bfloat16)
    enc_b = jnp.concatenate([online["enc_b"], target["enc_b"]], axis=1)
    x2d, enc_w, tk, nk = _tile_k(x2d, enc_w, tk)

    grid_spec = pltpu.PrefetchScalarGridSpec(
        num_scalar_prefetch=0,
        grid=(nk,),
        in_specs=[
            pl.BlockSpec((B, tk), lambda k: (0, k)),          # x          (bf16)
            pl.BlockSpec((tk, 2 * R), lambda k: (k, 0)),      # enc_w cat  (bf16)
            _const_spec((1, 2 * R)),                          # enc_b cat
        ] + _mlp_specs(R, Hd, P)                              # online projector
          + _mlp_specs(R, Hd, P)                              # target projector
          + _mlp_specs(P, Hd, P),                             # online predictor
        out_specs=_const_spec((1, 1)),
        scratch_shapes=[pltpu.VMEM((B, 2 * R), jnp.float32)],
    )
    loss = pl.pallas_call(
        _byol_kernel,
        out_shape=jax.ShapeDtypeStruct((1, 1), jnp.float32),
        grid_spec=grid_spec,
        compiler_params=pltpu.CompilerParams(
            dimension_semantics=("arbitrary",),
            vmem_limit_bytes=_vmem_limit_bytes()),
    )(x2d, enc_w, enc_b,
      *_mlp_operands(online, "proj_"),
      *_mlp_operands(target, "proj_"),
      *_mlp_operands(predictor, "pred_"))
    return loss[0, 0]


# ------------------------------------------------------------ model params --

def init_params(key, in_dim, repr_dim, proj_hidden, proj_size):
    ks = jax.random.split(key, 8)

    def lin(k, fan_in, fan_out):
        bound = 1.0 / jnp.sqrt(fan_in)
        w = jax.random.uniform(k, (fan_in, fan_out), jnp.float32, -bound, bound)
        b = jnp.zeros((1, fan_out), jnp.float32)
        return w, b

    enc_w, enc_b = lin(ks[0], in_dim, repr_dim)          # synthetic backbone `net`
    pj1_w, pj1_b = lin(ks[1], repr_dim, proj_hidden)     # projector MLP
    pj2_w, pj2_b = lin(ks[2], proj_hidden, proj_size)
    pr1_w, pr1_b = lin(ks[3], proj_size, proj_hidden)    # online predictor MLP
    pr2_w, pr2_b = lin(ks[4], proj_hidden, proj_size)

    encoder = dict(
        enc_w=enc_w, enc_b=enc_b,
        proj_w1=pj1_w, proj_b1=pj1_b,
        proj_g=jnp.ones((1, proj_hidden), jnp.float32),
        proj_beta=jnp.zeros((1, proj_hidden), jnp.float32),
        proj_w2=pj2_w, proj_b2=pj2_b,
    )
    predictor = dict(
        pred_w1=pr1_w, pred_b1=pr1_b,
        pred_g=jnp.ones((1, proj_hidden), jnp.float32),
        pred_beta=jnp.zeros((1, proj_hidden), jnp.float32),
        pred_w2=pr2_w, pred_b2=pr2_b,
    )
    # target encoder = deepcopy(online encoder) at first forward (identical params)
    target = {k: v for k, v in encoder.items()}
    return dict(online=encoder, target=target, predictor=predictor)


# ------------------------------------------------------------------- driver --

if __name__ == "__main__":
    # NOTE: B=2 is a smoke-test shape; production batches (>=128) are needed to
    # fill the MXU M dimension — tiling decisions here target the K/N axes.
    B, C, H, W = 2, 6, 16, 16          # C multiple of 3 (frame stacking)
    REPR_DIM = 128
    PROJ_HIDDEN = 256                  # projection_hidden_size (small for test)
    PROJ_SIZE = 128                    # projection_size (small for test)

    key = jax.random.PRNGKey(0)
    k_obs, k_params = jax.random.split(key)
    obs = jax.random.normal(k_obs, (B, C, H, W), jnp.float32)

    params = init_params(k_params, C * H * W, REPR_DIM, PROJ_HIDDEN, PROJ_SIZE)

    # NetWrapper.forward -> (projection, representation)
    proj, rep = netwrapper_forward(params["online"], obs)
    # Full BYOL forward -> scalar loss (fused dual-encoder + predictor + loss)
    loss = byol_forward(params, obs)
    jax.block_until_ready((proj, rep, loss))

    assert proj.shape == (B, PROJ_SIZE) and rep.shape == (B, REPR_DIM)
    assert loss.shape == () and bool(jnp.isfinite(loss))
    assert bool(jnp.all(jnp.isfinite(proj))) and bool(jnp.all(jnp.isfinite(rep)))
    print("KERNEL_OK")
</pallas_src>

<mosaic_0001>
module attributes {stable_mosaic.version = 11 : i64} {
  func.func @_netwrapper_kernel(%arg0: i32, %arg1: memref<2x1536xbf16, #tpu.memory_space<vmem>>, %arg2: memref<1536x128xbf16, #tpu.memory_space<vmem>>, %arg3: memref<1x128xf32, #tpu.memory_space<vmem>>, %arg4: memref<128x256xbf16, #tpu.memory_space<vmem>>, %arg5: memref<1x256xf32, #tpu.memory_space<vmem>>, %arg6: memref<1x256xf32, #tpu.memory_space<vmem>>, %arg7: memref<1x256xf32, #tpu.memory_space<vmem>>, %arg8: memref<256x128xbf16, #tpu.memory_space<vmem>>, %arg9: memref<1x128xf32, #tpu.memory_space<vmem>>, %arg10: memref<2x128xf32, #tpu.memory_space<vmem>>, %arg11: memref<2x128xf32, #tpu.memory_space<vmem>>, %arg12: memref<2x128xf32, #tpu.memory_space<vmem>>) attributes {dimension_semantics = [#tpu.dimension_semantics<arbitrary>], iteration_bounds = array<i64: 1>, scalar_prefetch = 0 : i64, scratch_operands = 1 : i64, tpu.core_type = #tpu.core_type<tc>, window_params = [{transform_indices = @transform_0, window_bounds = array<i64: 2, 1536>}, {transform_indices = @transform_1, window_bounds = array<i64: 1536, 128>}, {pipeline_mode = #tpu.pipeline_mode<synchronous>, transform_indices = @transform_2, window_bounds = array<i64: 1, 128>}, {pipeline_mode = #tpu.pipeline_mode<synchronous>, transform_indices = @transform_3, window_bounds = array<i64: 128, 256>}, {pipeline_mode = #tpu.pipeline_mode<synchronous>, transform_indices = @transform_4, window_bounds = array<i64: 1, 256>}, {pipeline_mode = #tpu.pipeline_mode<synchronous>, transform_indices = @transform_5, window_bounds = array<i64: 1, 256>}, {pipeline_mode = #tpu.pipeline_mode<synchronous>, transform_indices = @transform_6, window_bounds = array<i64: 1, 256>}, {pipeline_mode = #tpu.pipeline_mode<synchronous>, transform_indices = @transform_7, window_bounds = array<i64: 256, 128>}, {pipeline_mode = #tpu.pipeline_mode<synchronous>, transform_indices = @transform_8, window_bounds = array<i64: 1, 128>}, {pipeline_mode = #tpu.pipeline_mode<synchronous>, transform_indices = @transform_9, window_bounds = array<i64: 2, 128>}, {pipeline_mode = #tpu.pipeline_mode<synchronous>, transform_indices = @transform_10, window_bounds = array<i64: 2, 128>}]} {
    %c0_i32 = arith.constant 0 : i32
    %0 = arith.cmpi eq, %arg0, %c0_i32 : i32
    %1 = arith.extui %0 : i1 to i32
    %c0_i32_0 = arith.constant 0 : i32
    %2 = arith.cmpi ne, %1, %c0_i32_0 : i32
    scf.if %2 {
      %cst_10 = arith.constant 0.000000e+00 : f32
      %12 = vector.broadcast %cst_10 : f32 to vector<2x128xf32>
      %c0_11 = arith.constant 0 : index
      %c0_12 = arith.constant 0 : index
      %13 = vector.load %arg12[%c0_11, %c0_12] : memref<2x128xf32, #tpu.memory_space<vmem>>, vector<2x128xf32>
      tpu.vector_store %arg12[%c0_11, %c0_12], %12 {strides = array<i32>} : memref<2x128xf32, #tpu.memory_space<vmem>>, vector<2x128xf32>,
    } else {
    }
    %c0 = arith.constant 0 : index
    %c0_1 = arith.constant 0 : index
    %3 = vector.load %arg12[%c0, %c0_1] : memref<2x128xf32, #tpu.memory_space<vmem>>, vector<2x128xf32>
    %c0_2 = arith.constant 0 : index
    %c0_3 = arith.constant 0 : index
    %4 = vector.load %arg1[%c0_2, %c0_3] : memref<2x1536xbf16, #tpu.memory_space<vmem>>, vector<2x1536xbf16>
    %c0_4 = arith.constant 0 : index
    %c0_5 = arith.constant 0 : index
    %5 = vector.load %arg2[%c0_4, %c0_5] : memref<1536x128xbf16, #tpu.memory_space<vmem>>, vector<1536x128xbf16>
    %cst = arith.constant dense<0.000000e+00> : vector<2x128xf32>
    %6 = tpu.matmul %4, %5, %cst {dimension_numbers = #tpu.dot_dimension_numbers<[1], [0], [0], [1], [0, 0, 1, 1], [], []>} : vector<2x1536xbf16>, vector<1536x128xbf16>, vector<2x128xf32> -> vector<2x128xf32>
    %7 = arith.addf %3, %6 : vector<2x128xf32>
    %c0_6 = arith.constant 0 : index
    %c0_7 = arith.constant 0 : index
    %8 = vector.load %arg12[%c0_6, %c0_7] : memref<2x128xf32, #tpu.memory_space<vmem>>, vector<2x128xf32>
    tpu.vector_store %arg12[%c0_6, %c0_7], %7 {strides = array<i32>} : memref<2x128xf32, #tpu.memory_space<vmem>>, vector<2x128xf32>,
    %c0_i32_8 = arith.constant 0 : i32
    %9 = arith.cmpi eq, %arg0, %c0_i32_8 : i32
    %10 = arith.extui %9 : i1 to i32
    %c0_i32_9 = arith.constant 0 : i32
    %11 = arith.cmpi ne, %10, %c0_i32_9 : i32
    scf.if %11 {
      %c0_10 = arith.constant 0 : index
      %c0_11 = arith.constant 0 : index
      %12 = vector.load %arg12[%c0_10, %c0_11] : memref<2x128xf32, #tpu.memory_space<vmem>>, vector<2x128xf32>
      %c0_12 = arith.constant 0 : index
      %c0_13 = arith.constant 0 : index
      %13 = vector.load %arg3[%c0_12, %c0_13] : memref<1x128xf32, #tpu.memory_space<vmem>>, vector<1x128xf32>
      %14 = vector.broadcast %13 : vector<1x128xf32> to vector<2x128xf32>
      %15 = arith.addf %12, %14 : vector<2x128xf32>
      %cst_14 = arith.constant 0.000000e+00 : f32
      %16 = vector.broadcast %cst_14 : f32 to vector<2x128xf32>
      %17 = arith.maximumf %15, %16 : vector<2x128xf32>
      %c0_15 = arith.constant 0 : index
      %c0_16 = arith.constant 0 : index
      %18 = vector.load %arg11[%c0_15, %c0_16] : memref<2x128xf32, #tpu.memory_space<vmem>>, vector<2x128xf32>
      tpu.vector_store %arg11[%c0_15, %c0_16], %17 {strides = array<i32>} : memref<2x128xf32, #tpu.memory_space<vmem>>, vector<2x128xf32>,
      %19 = arith.truncf %17 : vector<2x128xf32> to vector<2x128xbf16>
      %c0_17 = arith.constant 0 : index
      %c0_18 = arith.constant 0 : index
      %20 = vector.load %arg4[%c0_17, %c0_18] : memref<128x256xbf16, #tpu.memory_space<vmem>>, vector<128x256xbf16>
      %cst_19 = arith.constant dense<0.000000e+00> : vector<2x256xf32>
      %21 = tpu.matmul %19, %20, %cst_19 {dimension_numbers = #tpu.dot_dimension_numbers<[1], [0], [0], [1], [0, 0, 1, 1], [], []>} : vector<2x128xbf16>, vector<128x256xbf16>, vector<2x256xf32> -> vector<2x256xf32>
      %c0_20 = arith.constant 0 : index
      %c0_21 = arith.constant 0 : index
      %22 = vector.load %arg5[%c0_20, %c0_21] : memref<1x256xf32, #tpu.memory_space<vmem>>, vector<1x256xf32>
      %23 = vector.broadcast %22 : vector<1x256xf32> to vector<2x256xf32>
      %24 = arith.addf %21, %23 : vector<2x256xf32>
      %c0_22 = arith.constant 0 : index
      %c0_23 = arith.constant 0 : index
      %25 = vector.load %arg6[%c0_22, %c0_23] : memref<1x256xf32, #tpu.memory_space<vmem>>, vector<1x256xf32>
      %c0_24 = arith.constant 0 : index
      %c0_25 = arith.constant 0 : index
      %26 = vector.load %arg7[%c0_24, %c0_25] : memref<1x256xf32, #tpu.memory_space<vmem>>, vector<1x256xf32>
      %cst_26 = arith.constant dense<0.000000e+00> : vector<256xf32>
      %27 = vector.multi_reduction <add>, %24, %cst_26 [0] : vector<2x256xf32> to vector<256xf32>
      %28 = vector.shape_cast %27 : vector<256xf32> to vector<1x256xf32>
      %cst_27 = arith.constant 2.000000e+00 : f32
      %29 = vector.broadcast %cst_27 : f32 to vector<1x256xf32>
      %30 = arith.divf %28, %29 : vector<1x256xf32>
      %31 = vector.broadcast %30 : vector<1x256xf32> to vector<2x256xf32>
      %32 = arith.subf %24, %31 : vector<2x256xf32>
      %33 = arith.mulf %32, %32 : vector<2x256xf32>
      %cst_28 = arith.constant dense<0.000000e+00> : vector<256xf32>
      %34 = vector.multi_reduction <add>, %33, %cst_28 [0] : vector<2x256xf32> to vector<256xf32>
      %35 = vector.shape_cast %34 : vector<256xf32> to vector<1x256xf32>
      %cst_29 = arith.constant 2.000000e+00 : f32
      %36 = vector.broadcast %cst_29 : f32 to vector<1x256xf32>
      %37 = arith.divf %35, %36 : vector<1x256xf32>
      %cst_30 = arith.constant 9.99999974E-6 : f32
      %38 = vector.broadcast %cst_30 : f32 to vector<1x256xf32>
      %39 = arith.addf %37, %38 : vector<1x256xf32>
      %40 = math.rsqrt %39 : vector<1x256xf32>
      %41 = vector.broadcast %40 : vector<1x256xf32> to vector<2x256xf32>
      %42 = arith.mulf %32, %41 : vector<2x256xf32>
      %43 = vector.broadcast %25 : vector<1x256xf32> to vector<2x256xf32>
      %44 = arith.mulf %42, %43 : vector<2x256xf32>
      %45 = vector.broadcast %26 : vector<1x256xf32> to vector<2x256xf32>
      %46 = arith.addf %44, %45 : vector<2x256xf32>
      %cst_31 = arith.constant 0.000000e+00 : f32
      %47 = vector.broadcast %cst_31 : f32 to vector<2x256xf32>
      %48 = arith.maximumf %46, %47 : vector<2x256xf32>
      %49 = arith.truncf %48 : vector<2x256xf32> to vector<2x256xbf16>
      %c0_32 = arith.constant 0 : index
      %c0_33 = arith.constant 0 : index
      %50 = vector.load %arg8[%c0_32, %c0_33] : memref<256x128xbf16, #tpu.memory_space<vmem>>, vector<256x128xbf16>
      %cst_34 = arith.constant dense<0.000000e+00> : vector<2x128xf32>
      %51 = tpu.matmul %49, %50, %cst_34 {dimension_numbers = #tpu.dot_dimension_numbers<[1], [0], [0], [1], [0, 0, 1, 1], [], []>} : vector<2x256xbf16>, vector<256x128xbf16>, vector<2x128xf32> -> vector<2x128xf32>
      %c0_35 = arith.constant 0 : index
      %c0_36 = arith.constant 0 : index
      %52 = vector.load %arg9[%c0_35, %c0_36] : memref<1x128xf32, #tpu.memory_space<vmem>>, vector<1x128xf32>
      %53 = vector.broadcast %52 : vector<1x128xf32> to vector<2x128xf32>
      %54 = arith.addf %51, %53 : vector<2x128xf32>
      %c0_37 = arith.constant 0 : index
      %c0_38 = arith.constant 0 : index
      %55 = vector.load %arg10[%c0_37, %c0_38] : memref<2x128xf32, #tpu.memory_space<vmem>>, vector<2x128xf32>
      tpu.vector_store %arg10[%c0_37, %c0_38], %54 {strides = array<i32>} : memref<2x128xf32, #tpu.memory_space<vmem>>, vector<2x128xf32>,
    } else {
    }
    return
  }
  func.func @transform_0(%arg0: i32) -> (i32, i32) {
    %c0_i32 = arith.constant 0 : i32
    %c0_i32_0 = arith.constant 0 : i32
    return %c0_i32, %arg0 : i32, i32
  }
  func.func @transform_1(%arg0: i32) -> (i32, i32) {
    %c0_i32 = arith.constant 0 : i32
    %c0_i32_0 = arith.constant 0 : i32
    return %arg0, %c0_i32 : i32, i32
  }
  func.func @transform_2(%arg0: i32) -> (i32, i32) {
    %c0_i32 = arith.constant 0 : i32
    %c0_i32_0 = arith.constant 0 : i32
    %c0_i32_1 = arith.constant 0 : i32
    return %c0_i32, %c0_i32_0 : i32, i32
  }
  func.func @transform_3(%arg0: i32) -> (i32, i32) {
    %c0_i32 = arith.constant 0 : i32
    %c0_i32_0 = arith.constant 0 : i32
    %c0_i32_1 = arith.constant 0 : i32
    return %c0_i32, %c0_i32_0 : i32, i32
  }
  func.func @transform_4(%arg0: i32) -> (i32, i32) {
    %c0_i32 = arith.constant 0 : i32
    %c0_i32_0 = arith.constant 0 : i32
    %c0_i32_1 = arith.constant 0 : i32
    return %c0_i32, %c0_i32_0 : i32, i32
  }
  func.func @transform_5(%arg0: i32) -> (i32, i32) {
    %c0_i32 = arith.constant 0 : i32
    %c0_i32_0 = arith.constant 0 : i32
    %c0_i32_1 = arith.constant 0 : i32
    return %c0_i32, %c0_i32_0 : i32, i32
  }
  func.func @transform_6(%arg0: i32) -> (i32, i32) {
    %c0_i32 = arith.constant 0 : i32
    %c0_i32_0 = arith.constant 0 : i32
    %c0_i32_1 = arith.constant 0 : i32
    return %c0_i32, %c0_i32_0 : i32, i32
  }
  func.func @transform_7(%arg0: i32) -> (i32, i32) {
    %c0_i32 = arith.constant 0 : i32
    %c0_i32_0 = arith.constant 0 : i32
    %c0_i32_1 = arith.constant 0 : i32
    return %c0_i32, %c0_i32_0 : i32, i32
  }
  func.func @transform_8(%arg0: i32) -> (i32, i32) {
    %c0_i32 = arith.constant 0 : i32
    %c0_i32_0 = arith.constant 0 : i32
    %c0_i32_1 = arith.constant 0 : i32
    return %c0_i32, %c0_i32_0 : i32, i32
  }
  func.func @transform_9(%arg0: i32) -> (i32, i32) {
    %c0_i32 = arith.constant 0 : i32
    %c0_i32_0 = arith.constant 0 : i32
    %c0_i32_1 = arith.constant 0 : i32
    return %c0_i32, %c0_i32_0 : i32, i32
  }
  func.func @transform_10(%arg0: i32) -> (i32, i32) {
    %c0_i32 = arith.constant 0 : i32
    %c0_i32_0 = arith.constant 0 : i32
    %c0_i32_1 = arith.constant 0 : i32
    return %c0_i32, %c0_i32_0 : i32, i32
  }
}

</mosaic_0001>

<llo_original>
// kernel: netwrapper_forward.1
$region0: #{netwrapper_forward.1}
  #allocation0 [shape = 'u32[]', space=smem, size = 0x4, offset = 0x4, fixed_abs, tag = 'smem constant byte address 0x4 - core index']
  #allocation1 [shape = 'u32[144,128]{1,0:T(1,128)}', space=vmem, size = 0x12000, scoped, tag = 'internal scratch']
  #allocation2 [shape = 'f32[2,128]{1,0:T(2,128)}', space=vmem, size = 0x400, scoped, tag = 'scratch operand']
  %s0 = inlined_call_operand.vmem [shape: bf16[2,1536], index: 0, kind: input, shape index: {}]
  %s1 = inlined_call_operand.vmem [shape: bf16[1536,128], index: 1, kind: input, shape index: {}]
  %s2 = inlined_call_operand.vmem [shape: f32[1,128], index: 2, kind: input, shape index: {}]
  %s3 = inlined_call_operand.vmem [shape: bf16[128,256], index: 3, kind: input, shape index: {}]
  %s4 = inlined_call_operand.vmem [shape: f32[1,256], index: 4, kind: input, shape index: {}]
  %s5 = inlined_call_operand.vmem [shape: f32[1,256], index: 5, kind: input, shape index: {}]
  %s6 = inlined_call_operand.vmem [shape: f32[1,256], index: 6, kind: input, shape index: {}]
  %s7 = inlined_call_operand.vmem [shape: bf16[256,128], index: 7, kind: input, shape index: {}]
  %s8 = inlined_call_operand.vmem [shape: f32[1,128], index: 8, kind: input, shape index: {}]
  %s9 = inlined_call_operand.hbm [shape: f32[2,128], index: 9, kind: output, shape index: {0}]
  %s10 = inlined_call_operand.hbm [shape: f32[2,128], index: 10, kind: output, shape index: {1}]
  %11 = xla_tuple %s9, %s10
  %s12 = sld [smem:[#allocation0]]
  $region62: #{netwrapper_forward.1} parent=0
    _
  %s14 = ssub.s32 1, %s12
  %s15 = scalar_select 0, %s14, %s12
  $region1: #{netwrapper_forward.1} parent=0
    #allocation3 [shape = 'u8[1024]{0}', space=vmem, size = 0x400, scoped, tag = 'output window, operand 0, single buffered']
    #allocation4 [shape = 's32[1]{0}', space=sflag, size = 0x4, scoped, tag = 'scoped memory for netwrapper_forward.1']
    #allocation5 [shape = 'u8[1024]{0}', space=vmem, size = 0x400, scoped, tag = 'output window, operand 1, single buffered']
    #allocation6 [shape = 's32[1]{0}', space=sflag, size = 0x4, scoped, tag = 'scoped memory for netwrapper_forward.1']
    %16 = vsyncpa [#allocation4], 0
    %17 = vsyncpa [#allocation6], 0
    // Predicated region
    $region2: #{netwrapper_forward.1} parent=1 // pred_check
      _
    $region3: #{netwrapper_forward.1} parent=1 // pred_check_branch
      %19 = sbr.rel (0) target = $region5
    $region4: #{netwrapper_forward.1} parent=1 // pred_region
      _
    $region5: #{netwrapper_forward.1} parent=1 // pred_fallthru
      _
    // Predicated region
    $region6: #{netwrapper_forward.1} parent=1 // pred_check
      _
    $region7: #{netwrapper_forward.1} parent=1 // pred_check_branch
      %21 = sbr.rel (0) target = $region9
    $region8: #{netwrapper_forward.1} parent=1 // pred_region
      _
    $region9: #{netwrapper_forward.1} parent=1 // pred_fallthru
      _
    // Predicated region
    $region10: #{netwrapper_forward.1} parent=1 // pred_check
      _
    $region11: #{netwrapper_forward.1} parent=1 // pred_check_branch
      %23 = sbr.rel (0) target = $region13
    $region12: #{netwrapper_forward.1} parent=1 // pred_region
      _
    $region13: #{netwrapper_forward.1} parent=1 // pred_fallthru
      _
    // Predicated region
    $region14: #{netwrapper_forward.1} parent=1 // pred_check
      _
    $region15: #{netwrapper_forward.1} parent=1 // pred_check_branch
      %25 = sbr.rel (0) target = $region17
    $region16: #{netwrapper_forward.1} parent=1 // pred_region
      _
    $region17: #{netwrapper_forward.1} parent=1 // pred_fallthru
      _
    // Predicated region
    $region18: #{netwrapper_forward.1} parent=1 // pred_check
      _
    $region19: #{netwrapper_forward.1} parent=1 // pred_check_branch
      %27 = sbr.rel (0) target = $region21
    $region20: #{netwrapper_forward.1} parent=1 // pred_region
      _
    $region21: #{netwrapper_forward.1} parent=1 // pred_fallthru
      _
    // Predicated region
    $region22: #{netwrapper_forward.1} parent=1 // pred_check
      _
    $region23: #{netwrapper_forward.1} parent=1 // pred_check_branch
      %29 = sbr.rel (0) target = $region25
    $region24: #{netwrapper_forward.1} parent=1 // pred_region
      _
    $region25: #{netwrapper_forward.1} parent=1 // pred_fallthru
      _
    // Predicated region
    $region26: #{netwrapper_forward.1} parent=1 // pred_check
      _
    $region27: #{netwrapper_forward.1} parent=1 // pred_check_branch
      %31 = sbr.rel (0) target = $region29
    $region28: #{netwrapper_forward.1} parent=1 // pred_region
      _
    $region29: #{netwrapper_forward.1} parent=1 // pred_fallthru
      _
    // Predicated region
    $region30: #{netwrapper_forward.1} parent=1 // pred_check
      _
    $region31: #{netwrapper_forward.1} parent=1 // pred_check_branch
      %33 = sbr.rel (0) target = $region33
    $region32: #{netwrapper_forward.1} parent=1 // pred_region
      _
    $region33: #{netwrapper_forward.1} parent=1 // pred_fallthru
      _
    // Predicated region
    $region34: #{netwrapper_forward.1} parent=1 // pred_check
      _
    $region35: #{netwrapper_forward.1} parent=1 // pred_check_branch
      %35 = sbr.rel (0) target = $region37
    $region36: #{netwrapper_forward.1} parent=1 // pred_region
      _
    $region37: #{netwrapper_forward.1} parent=1 // pred_fallthru
      _
    %p37 = scmp.eq.s32.totalorder 0, 0
    // Predicated region
    $region38: #{netwrapper_forward.1} parent=1 // pred_check
      %p38 = pneg %p37
    $region39: #{netwrapper_forward.1} parent=1 // pred_check_branch
      %40 = sbr.rel (%p38) target = $region41
    $region40: #{netwrapper_forward.1} parent=1 // pred_region
      %41 = vst [vmem:[#allocation2] sm:$0x3] 0.0
    $region41: #{netwrapper_forward.1} parent=1 // pred_fallthru
      _
    %v42 = vld [vmem:[#allocation2] sm:$0x3]
    %v43 = vld [vmem:[%s0] sm:$0xff]
    %v44 = vld [vmem:[%s0 + $0x8] sm:$0xf]
    %v45 = vld [vmem:[%s1] sm:$0xf]
    %v46 = vld [vmem:[%s1 + $0x4] sm:$0xf]
    %v47 = vld [vmem:[%s1 + $0x8] sm:$0xf]
    %v48 = vld [vmem:[%s1 + $0xc] sm:$0xf]
    %v49 = vld [vmem:[%s1 + $0x10] sm:$0xf]
    %v50 = vld [vmem:[%s1 + $0x14] sm:$0xf]
    %v51 = vld [vmem:[%s1 + $0x18] sm:$0xf]
    %v52 = vld [vmem:[%s1 + $0x1c] sm:$0xf]
    %v53 = vld [vmem:[%s1 + $0x20] sm:$0xf]
    %v54 = vld [vmem:[%s1 + $0x24] sm:$0xf]
    %v55 = vld [vmem:[%s1 + $0x28] sm:$0xf]
    %v56 = vld [vmem:[%s1 + $0x2c] sm:$0xf]
    %v57 = vld [vmem:[%s1 + $0x30] sm:$0xf]
    %v58 = vld [vmem:[%s1 + $0x34] sm:$0xf]
    %v59 = vld [vmem:[%s1 + $0x38] sm:$0xf]
    %v60 = vld [vmem:[%s1 + $0x3c] sm:$0xf]
    %v61 = vld [vmem:[%s1 + $0x40] sm:$0xf]
    %v62 = vld [vmem:[%s1 + $0x44] sm:$0xf]
    %v63 = vld [vmem:[%s1 + $0x48] sm:$0xf]
    %v64 = vld [vmem:[%s1 + $0x4c] sm:$0xf]
    %v65 = vld [vmem:[%s1 + $0x50] sm:$0xf]
    %v66 = vld [vmem:[%s1 + $0x54] sm:$0xf]
    %v67 = vld [vmem:[%s1 + $0x58] sm:$0xf]
    %v68 = vld [vmem:[%s1 + $0x5c] sm:$0xf]
    %v69 = vld [vmem:[%s1 + $0x60] sm:$0xf]
    %v70 = vld [vmem:[%s1 + $0x64] sm:$0xf]
    %v71 = vld [vmem:[%s1 + $0x68] sm:$0xf]
    %v72 = vld [vmem:[%s1 + $0x6c] sm:$0xf]
    %v73 = vld [vmem:[%s1 + $0x70] sm:$0xf]
    %v74 = vld [vmem:[%s1 + $0x74] sm:$0xf]
    %v75 = vld [vmem:[%s1 + $0x78] sm:$0xf]
    %v76 = vld [vmem:[%s1 + $0x7c] sm:$0xf]
    %v77 = vld [vmem:[%s1 + $0x80] sm:$0xf]
    %v78 = vld [vmem:[%s1 + $0x84] sm:$0xf]
    %v79 = vld [vmem:[%s1 + $0x88] sm:$0xf]
    %v80 = vld [vmem:[%s1 + $0x8c] sm:$0xf]
    %v81 = vld [vmem:[%s1 + $0x90] sm:$0xf]
    %v82 = vld [vmem:[%s1 + $0x94] sm:$0xf]
    %v83 = vld [vmem:[%s1 + $0x98] sm:$0xf]
    %v84 = vld [vmem:[%s1 + $0x9c] sm:$0xf]
    %v85 = vld [vmem:[%s1 + $0xa0] sm:$0xf]
    %v86 = vld [vmem:[%s1 + $0xa4] sm:$0xf]
    %v87 = vld [vmem:[%s1 + $0xa8] sm:$0xf]
    %v88 = vld [vmem:[%s1 + $0xac] sm:$0xf]
    %v89 = vld [vmem:[%s1 + $0xb0] sm:$0xf]
    %v90 = vld [vmem:[%s1 + $0xb4] sm:$0xf]
    %v91 = vld [vmem:[%s1 + $0xb8] sm:$0xf]
    %v92 = vld [vmem:[%s1 + $0xbc] sm:$0xf]
    %v93 = vld [vmem:[%s1 + $0xc0] sm:$0xf]
    %v94 = vld [vmem:[%s1 + $0xc4] sm:$0xf]
    %v95 = vld [vmem:[%s1 + $0xc8] sm:$0xf]
    %v96 = vld [vmem:[%s1 + $0xcc] sm:$0xf]
    %v97 = vld [vmem:[%s1 + $0xd0] sm:$0xf]
    %v98 = vld [vmem:[%s1 + $0xd4] sm:$0xf]
    %v99 = vld [vmem:[%s1 + $0xd8] sm:$0xf]
    %v100 = vld [vmem:[%s1 + $0xdc] sm:$0xf]
    %v101 = vld [vmem:[%s1 + $0xe0] sm:$0xf]
    %v102 = vld [vmem:[%s1 + $0xe4] sm:$0xf]
    %v103 = vld [vmem:[%s1 + $0xe8] sm:$0xf]
    %v104 = vld [vmem:[%s1 + $0xec] sm:$0xf]
    %v105 = vld [vmem:[%s1 + $0xf0] sm:$0xf]
    %v106 = vld [vmem:[%s1 + $0xf4] sm:$0xf]
    %v107 = vld [vmem:[%s1 + $0xf8] sm:$0xf]
    %v108 = vld [vmem:[%s1 + $0xfc] sm:$0xf]
    %v109 = vld [vmem:[%s1 + $0x100] sm:$0xf]
    %v110 = vld [vmem:[%s1 + $0x104] sm:$0xf]
    %v111 = vld [vmem:[%s1 + $0x108] sm:$0xf]
    %v112 = vld [vmem:[%s1 + $0x10c] sm:$0xf]
    %v113 = vld [vmem:[%s1 + $0x110] sm:$0xf]
    %v114 = vld [vmem:[%s1 + $0x114] sm:$0xf]
    %v115 = vld [vmem:[%s1 + $0x118] sm:$0xf]
    %v116 = vld [vmem:[%s1 + $0x11c] sm:$0xf]
    %v117 = vld [vmem:[%s1 + $0x120] sm:$0xf]
    %v118 = vld [vmem:[%s1 + $0x124] sm:$0xf]
    %v119 = vld [vmem:[%s1 + $0x128] sm:$0xf]
    %v120 = vld [vmem:[%s1 + $0x12c] sm:$0xf]
    %v121 = vld [vmem:[%s1 + $0x130] sm:$0xf]
    %v122 = vld [vmem:[%s1 + $0x134] sm:$0xf]
    %v123 = vld [vmem:[%s1 + $0x138] sm:$0xf]
    %v124 = vld [vmem:[%s1 + $0x13c] sm:$0xf]
    %v125 = vld [vmem:[%s1 + $0x140] sm:$0xf]
    %v126 = vld [vmem:[%s1 + $0x144] sm:$0xf]
    %v127 = vld [vmem:[%s1 + $0x148] sm:$0xf]
    %v128 = vld [vmem:[%s1 + $0x14c] sm:$0xf]
    %v129 = vld [vmem:[%s1 + $0x150] sm:$0xf]
    %v130 = vld [vmem:[%s1 + $0x154] sm:$0xf]
    %v131 = vld [vmem:[%s1 + $0x158] sm:$0xf]
    %v132 = vld [vmem:[%s1 + $0x15c] sm:$0xf]
    %v133 = vld [vmem:[%s1 + $0x160] sm:$0xf]
    %v134 = vld [vmem:[%s1 + $0x164] sm:$0xf]
    %v135 = vld [vmem:[%s1 + $0x168] sm:$0xf]
    %v136 = vld [vmem:[%s1 + $0x16c] sm:$0xf]
    %v137 = vld [vmem:[%s1 + $0x170] sm:$0xf]
    %v138 = vld [vmem:[%s1 + $0x174] sm:$0xf]
    %v139 = vld [vmem:[%s1 + $0x178] sm:$0xf]
    %v140 = vld [vmem:[%s1 + $0x17c] sm:$0xf]
    %v141 = vld [vmem:[%s1 + $0x180] sm:$0xf]
    %v142 = vld [vmem:[%s1 + $0x184] sm:$0xf]
    %v143 = vld [vmem:[%s1 + $0x188] sm:$0xf]
    %v144 = vld [vmem:[%s1 + $0x18c] sm:$0xf]
    %v145 = vld [vmem:[%s1 + $0x190] sm:$0xf]
    %v146 = vld [vmem:[%s1 + $0x194] sm:$0xf]
    %v147 = vld [vmem:[%s1 + $0x198] sm:$0xf]
    %v148 = vld [vmem:[%s1 + $0x19c] sm:$0xf]
    %v149 = vld [vmem:[%s1 + $0x1a0] sm:$0xf]
    %v150 = vld [vmem:[%s1 + $0x1a4] sm:$0xf]
    %v151 = vld [vmem:[%s1 + $0x1a8] sm:$0xf]
    %v152 = vld [vmem:[%s1 + $0x1ac] sm:$0xf]
    %v153 = vld [vmem:[%s1 + $0x1b0] sm:$0xf]
    %v154 = vld [vmem:[%s1 + $0x1b4] sm:$0xf]
    %v155 = vld [vmem:[%s1 + $0x1b8] sm:$0xf]
    %v156 = vld [vmem:[%s1 + $0x1bc] sm:$0xf]
    %v157 = vld [vmem:[%s1 + $0x1c0] sm:$0xf]
    %v158 = vld [vmem:[%s1 + $0x1c4] sm:$0xf]
    %v159 = vld [vmem:[%s1 + $0x1c8] sm:$0xf]
    %v160 = vld [vmem:[%s1 + $0x1cc] sm:$0xf]
    %v161 = vld [vmem:[%s1 + $0x1d0] sm:$0xf]
    %v162 = vld [vmem:[%s1 + $0x1d4] sm:$0xf]
    %v163 = vld [vmem:[%s1 + $0x1d8] sm:$0xf]
    %v164 = vld [vmem:[%s1 + $0x1dc] sm:$0xf]
    %v165 = vld [vmem:[%s1 + $0x1e0] sm:$0xf]
    %v166 = vld [vmem:[%s1 + $0x1e4] sm:$0xf]
    %v167 = vld [vmem:[%s1 + $0x1e8] sm:$0xf]
    %v168 = vld [vmem:[%s1 + $0x1ec] sm:$0xf]
    %v169 = vld [vmem:[%s1 + $0x1f0] sm:$0xf]
    %v170 = vld [vmem:[%s1 + $0x1f4] sm:$0xf]
    %v171 = vld [vmem:[%s1 + $0x1f8] sm:$0xf]
    %v172 = vld [vmem:[%s1 + $0x1fc] sm:$0xf]
    %v173 = vld [vmem:[%s1 + $0x200] sm:$0xf]
    %v174 = vld [vmem:[%s1 + $0x204] sm:$0xf]
    %v175 = vld [vmem:[%s1 + $0x208] sm:$0xf]
    %v176 = vld [vmem:[%s1 + $0x20c] sm:$0xf]
    %v177 = vld [vmem:[%s1 + $0x210] sm:$0xf]
    %v178 = vld [vmem:[%s1 + $0x214] sm:$0xf]
    %v179 = vld [vmem:[%s1 + $0x218] sm:$0xf]
    %v180 = vld [vmem:[%s1 + $0x21c] sm:$0xf]
    %v181 = vld [vmem:[%s1 + $0x220] sm:$0xf]
    %v182 = vld [vmem:[%s1 + $0x224] sm:$0xf]
    %v183 = vld [vmem:[%s1 + $0x228] sm:$0xf]
    %v184 = vld [vmem:[%s1 + $0x22c] sm:$0xf]
    %v185 = vld [vmem:[%s1 + $0x230] sm:$0xf]
    %v186 = vld [vmem:[%s1 + $0x234] sm:$0xf]
    %v187 = vld [vmem:[%s1 + $0x238] sm:$0xf]
    %v188 = vld [vmem:[%s1 + $0x23c] sm:$0xf]
    %v189 = vld [vmem:[%s1 + $0x240] sm:$0xf]
    %v190 = vld [vmem:[%s1 + $0x244] sm:$0xf]
    %v191 = vld [vmem:[%s1 + $0x248] sm:$0xf]
    %v192 = vld [vmem:[%s1 + $0x24c] sm:$0xf]
    %v193 = vld [vmem:[%s1 + $0x250] sm:$0xf]
    %v194 = vld [vmem:[%s1 + $0x254] sm:$0xf]
    %v195 = vld [vmem:[%s1 + $0x258] sm:$0xf]
    %v196 = vld [vmem:[%s1 + $0x25c] sm:$0xf]
    %v197 = vld [vmem:[%s1 + $0x260] sm:$0xf]
    %v198 = vld [vmem:[%s1 + $0x264] sm:$0xf]
    %v199 = vld [vmem:[%s1 + $0x268] sm:$0xf]
    %v200 = vld [vmem:[%s1 + $0x26c] sm:$0xf]
    %v201 = vld [vmem:[%s1 + $0x270] sm:$0xf]
    %v202 = vld [vmem:[%s1 + $0x274] sm:$0xf]
    %v203 = vld [vmem:[%s1 + $0x278] sm:$0xf]
    %v204 = vld [vmem:[%s1 + $0x27c] sm:$0xf]
    %v205 = vld [vmem:[%s1 + $0x280] sm:$0xf]
    %v206 = vld [vmem:[%s1 + $0x284] sm:$0xf]
    %v207 = vld [vmem:[%s1 + $0x288] sm:$0xf]
    %v208 = vld [vmem:[%s1 + $0x28c] sm:$0xf]
    %v209 = vld [vmem:[%s1 + $0x290] sm:$0xf]
    %v210 = vld [vmem:[%s1 + $0x294] sm:$0xf]
    %v211 = vld [vmem:[%s1 + $0x298] sm:$0xf]
    %v212 = vld [vmem:[%s1 + $0x29c] sm:$0xf]
    %v213 = vld [vmem:[%s1 + $0x2a0] sm:$0xf]
    %v214 = vld [vmem:[%s1 + $0x2a4] sm:$0xf]
    %v215 = vld [vmem:[%s1 + $0x2a8] sm:$0xf]
    %v216 = vld [vmem:[%s1 + $0x2ac] sm:$0xf]
    %v217 = vld [vmem:[%s1 + $0x2b0] sm:$0xf]
    %v218 = vld [vmem:[%s1 + $0x2b4] sm:$0xf]
    %v219 = vld [vmem:[%s1 + $0x2b8] sm:$0xf]
    %v220 = vld [vmem:[%s1 + $0x2bc] sm:$0xf]
    %v221 = vld [vmem:[%s1 + $0x2c0] sm:$0xf]
    %v222 = vld [vmem:[%s1 + $0x2c4] sm:$0xf]
    %v223 = vld [vmem:[%s1 + $0x2c8] sm:$0xf]
    %v224 = vld [vmem:[%s1 + $0x2cc] sm:$0xf]
    %v225 = vld [vmem:[%s1 + $0x2d0] sm:$0xf]
    %v226 = vld [vmem:[%s1 + $0x2d4] sm:$0xf]
    %v227 = vld [vmem:[%s1 + $0x2d8] sm:$0xf]
    %v228 = vld [vmem:[%s1 + $0x2dc] sm:$0xf]
    %v229 = vld [vmem:[%s1 + $0x2e0] sm:$0xf]
    %v230 = vld [vmem:[%s1 + $0x2e4] sm:$0xf]
    %v231 = vld [vmem:[%s1 + $0x2e8] sm:$0xf]
    %v232 = vld [vmem:[%s1 + $0x2ec] sm:$0xf]
    %v233 = vld [vmem:[%s1 + $0x2f0] sm:$0xf]
    %v234 = vld [vmem:[%s1 + $0x2f4] sm:$0xf]
    %v235 = vld [vmem:[%s1 + $0x2f8] sm:$0xf]
    %v236 = vld [vmem:[%s1 + $0x2fc] sm:$0xf]
    %v239 = vcombine.high %v43, %v43
    %v241 = vunpack.c.l.s4 1966171168
    %v242 = vunpack.c.0.s8 %v241
    %v243 = vlaneseq
    %v244 = vshrl.u32 %v243, 7
    %v245 = vsub.s32 %v242, %v244
    %v246 = vrot.slane %v43, %v245
    %v248 = vunpack.c.l.s4 1966171168
    %v249 = vunpack.c.0.s8 %v248
    %v250 = vlaneseq
    %v251 = vshrl.u32 %v250, 7
    %v252 = vsub.s32 %v249, %v251
    %v253 = vrot.slane %v239, %v252
    %v254 = vcombine.high %v246, %v246
    %v255 = vcombine.high %v253, %v253
    %v257 = vunpack.c.l.s4 1966171168
    %v258 = vunpack.c.0.s8 %v257
    %v259 = vlaneseq
    %v260 = vshrl.u32 %v259, 7
    %v261 = vsub.s32 %v258, %v260
    %v262 = vrot.slane %v246, %v261
    %v264 = vunpack.c.l.s4 1966171168
    %v265 = vunpack.c.0.s8 %v264
    %v266 = vlaneseq
    %v267 = vshrl.u32 %v266, 7
    %v268 = vsub.s32 %v265, %v267
    %v269 = vrot.slane %v253, %v268
    %v271 = vunpack.c.l.s4 1966171168
    %v272 = vunpack.c.0.s8 %v271
    %v273 = vlaneseq
    %v274 = vshrl.u32 %v273, 7
    %v275 = vsub.s32 %v272, %v274
    %v276 = vrot.slane %v254, %v275
    %v278 = vunpack.c.l.s4 1966171168
    %v279 = vunpack.c.0.s8 %v278
    %v280 = vlaneseq
    %v281 = vshrl.u32 %v280, 7
    %v282 = vsub.s32 %v279, %v281
    %v283 = vrot.slane %v255, %v282
    %v284 = vcombine.high %v262, %v262
    %v285 = vcombine.high %v269, %v269
    %v286 = vcombine.high %v276, %v276
    %v287 = vcombine.high %v283, %v283
    %v289 = vunpack.c.l.s4 1966171168
    %v290 = vunpack.c.0.s8 %v289
    %v291 = vlaneseq
    %v292 = vshrl.u32 %v291, 7
    %v293 = vsub.s32 %v290, %v292
    %v294 = vrot.slane %v44, %v293
    %v295 = vcombine.high %v294, %v294
    %v297 = vunpack.c.l.s4 1966171168
    %v298 = vunpack.c.0.s8 %v297
    %v299 = vlaneseq
    %v300 = vshrl.u32 %v299, 7
    %v301 = vsub.s32 %v298, %v300
    %v302 = vrot.slane %v294, %v301
    %v304 = vunpack.c.l.s4 1966171168
    %v305 = vunpack.c.0.s8 %v304
    %v306 = vlaneseq
    %v307 = vshrl.u32 %v306, 7
    %v308 = vsub.s32 %v305, %v307
    %v309 = vrot.slane %v295, %v308
    %v310 = vcombine.high %v302, %v302
    %v311 = vcombine.high %v309, %v309
    %v516 = vunpack.c.l.b16 %v45
    %v517 = vunpack.c.l.b16 %v46
    %v518 = vunpack.c.l.b16 %v47
    %v519 = vunpack.c.l.b16 %v48
    %v520 = vunpack.c.l.b16 %v49
    %v521 = vunpack.c.l.b16 %v50
    %v522 = vunpack.c.l.b16 %v51
    %v523 = vunpack.c.l.b16 %v52
    %v524 = vunpack.c.l.b16 %v53
    %v525 = vunpack.c.l.b16 %v54
    %v526 = vunpack.c.l.b16 %v55
    %v527 = vunpack.c.l.b16 %v56
    %v528 = vunpack.c.l.b16 %v57
    %v529 = vunpack.c.l.b16 %v58
    %v530 = vunpack.c.l.b16 %v59
    %v531 = vunpack.c.l.b16 %v60
    %v532 = vunpack.c.l.b16 %v61
    %v533 = vunpack.c.l.b16 %v62
    %v534 = vunpack.c.l.b16 %v63
    %v535 = vunpack.c.l.b16 %v64
    %v536 = vunpack.c.l.b16 %v65
    %v537 = vunpack.c.l.b16 %v66
    %v538 = vunpack.c.l.b16 %v67
    %v539 = vunpack.c.l.b16 %v68
    %v540 = vunpack.c.l.b16 %v69
    %v541 = vunpack.c.l.b16 %v70
    %v542 = vunpack.c.l.b16 %v71
    %v543 = vunpack.c.l.b16 %v72
    %v544 = vunpack.c.l.b16 %v73
    %v545 = vunpack.c.l.b16 %v74
    %v546 = vunpack.c.l.b16 %v75
    %v547 = vunpack.c.l.b16 %v76
    %v548 = vunpack.c.l.b16 %v77
    %v549 = vunpack.c.l.b16 %v78
    %v550 = vunpack.c.l.b16 %v79
    %v551 = vunpack.c.l.b16 %v80
    %v552 = vunpack.c.l.b16 %v81
    %v553 = vunpack.c.l.b16 %v82
    %v554 = vunpack.c.l.b16 %v83
    %v555 = vunpack.c.l.b16 %v84
    %v556 = vunpack.c.l.b16 %v85
    %v557 = vunpack.c.l.b16 %v86
    %v558 = vunpack.c.l.b16 %v87
    %v559 = vunpack.c.l.b16 %v88
    %v560 = vunpack.c.l.b16 %v89
    %v561 = vunpack.c.l.b16 %v90
    %v562 = vunpack.c.l.b16 %v91
    %v563 = vunpack.c.l.b16 %v92
    %v564 = vunpack.c.l.b16 %v93
    %v565 = vunpack.c.l.b16 %v94
    %v566 = vunpack.c.l.b16 %v95
    %v567 = vunpack.c.l.b16 %v96
    %v568 = vunpack.c.l.b16 %v97
    %v569 = vunpack.c.l.b16 %v98
    %v570 = vunpack.c.l.b16 %v99
    %v571 = vunpack.c.l.b16 %v100
    %v572 = vunpack.c.l.b16 %v101
    %v573 = vunpack.c.l.b16 %v102
    %v574 = vunpack.c.l.b16 %v103
    %v575 = vunpack.c.l.b16 %v104
    %v576 = vunpack.c.l.b16 %v105
    %v577 = vunpack.c.l.b16 %v106
    %v578 = vunpack.c.l.b16 %v107
    %v579 = vunpack.c.l.b16 %v108
    %v580 = vunpack.c.l.b16 %v109
    %v581 = vunpack.c.l.b16 %v110
    %v582 = vunpack.c.l.b16 %v111
    %v583 = vunpack.c.l.b16 %v112
    %v584 = vunpack.c.l.b16 %v113
    %v585 = vunpack.c.l.b16 %v114
    %v586 = vunpack.c.l.b16 %v115
    %v587 = vunpack.c.l.b16 %v116
    %v588 = vunpack.c.l.b16 %v117
    %v589 = vunpack.c.l.b16 %v118
    %v590 = vunpack.c.l.b16 %v119
    %v591 = vunpack.c.l.b16 %v120
    %v592 = vunpack.c.l.b16 %v121
    %v593 = vunpack.c.l.b16 %v122
    %v594 = vunpack.c.l.b16 %v123
    %v595 = vunpack.c.l.b16 %v124
    %v596 = vunpack.c.l.b16 %v125
    %v597 = vunpack.c.l.b16 %v126
    %v598 = vunpack.c.l.b16 %v127
    %v599 = vunpack.c.l.b16 %v128
    %v600 = vunpack.c.l.b16 %v129
    %v601 = vunpack.c.l.b16 %v130
    %v602 = vunpack.c.l.b16 %v131
    %v603 = vunpack.c.l.b16 %v132
    %v604 = vunpack.c.l.b16 %v133
    %v605 = vunpack.c.l.b16 %v134
    %v606 = vunpack.c.l.b16 %v135
    %v607 = vunpack.c.l.b16 %v136
    %v608 = vunpack.c.l.b16 %v137
    %v609 = vunpack.c.l.b16 %v138
    %v610 = vunpack.c.l.b16 %v139
    %v611 = vunpack.c.l.b16 %v140
    %v612 = vunpack.c.l.b16 %v141
    %v613 = vunpack.c.l.b16 %v142
    %v614 = vunpack.c.l.b16 %v143
    %v615 = vunpack.c.l.b16 %v144
    %v616 = vunpack.c.l.b16 %v145
    %v617 = vunpack.c.l.b16 %v146
    %v618 = vunpack.c.l.b16 %v147
    %v619 = vunpack.c.l.b16 %v148
    %v620 = vunpack.c.l.b16 %v149
    %v621 = vunpack.c.l.b16 %v150
    %v622 = vunpack.c.l.b16 %v151
    %v623 = vunpack.c.l.b16 %v152
    %v624 = vunpack.c.l.b16 %v153
    %v625 = vunpack.c.l.b16 %v154
    %v626 = vunpack.c.l.b16 %v155
    %v627 = vunpack.c.l.b16 %v156
    %v628 = vunpack.c.l.b16 %v157
    %v629 = vunpack.c.l.b16 %v158
    %v630 = vunpack.c.l.b16 %v159
    %v631 = vunpack.c.l.b16 %v160
    %v632 = vunpack.c.l.b16 %v161
    %v633 = vunpack.c.l.b16 %v162
    %v634 = vunpack.c.l.b16 %v163
    %v635 = vunpack.c.l.b16 %v164
    %v636 = vunpack.c.l.b16 %v165
    %v637 = vunpack.c.l.b16 %v166
    %v638 = vunpack.c.l.b16 %v167
    %v639 = vunpack.c.l.b16 %v168
    %v640 = vunpack.c.l.b16 %v169
    %v641 = vunpack.c.l.b16 %v170
    %v642 = vunpack.c.l.b16 %v171
    %v643 = vunpack.c.l.b16 %v172
    %v644 = vunpack.c.l.b16 %v173
    %v645 = vunpack.c.l.b16 %v174
    %v646 = vunpack.c.l.b16 %v175
    %v647 = vunpack.c.l.b16 %v176
    %v648 = vunpack.c.l.b16 %v177
    %v649 = vunpack.c.l.b16 %v178
    %v650 = vunpack.c.l.b16 %v179
    %v651 = vunpack.c.l.b16 %v180
    %v652 = vunpack.c.l.b16 %v181
    %v653 = vunpack.c.l.b16 %v182
    %v654 = vunpack.c.l.b16 %v183
    %v655 = vunpack.c.l.b16 %v184
    %v656 = vunpack.c.l.b16 %v185
    %v657 = vunpack.c.l.b16 %v186
    %v658 = vunpack.c.l.b16 %v187
    %v659 = vunpack.c.l.b16 %v188
    %v660 = vunpack.c.l.b16 %v189
    %v661 = vunpack.c.l.b16 %v190
    %v662 = vunpack.c.l.b16 %v191
    %v663 = vunpack.c.l.b16 %v192
    %v664 = vunpack.c.l.b16 %v193
    %v665 = vunpack.c.l.b16 %v194
    %v666 = vunpack.c.l.b16 %v195
    %v667 = vunpack.c.l.b16 %v196
    %v668 = vunpack.c.l.b16 %v197
    %v669 = vunpack.c.l.b16 %v198
    %v670 = vunpack.c.l.b16 %v199
    %v671 = vunpack.c.l.b16 %v200
    %v672 = vunpack.c.l.b16 %v201
    %v673 = vunpack.c.l.b16 %v202
    %v674 = vunpack.c.l.b16 %v203
    %v675 = vunpack.c.l.b16 %v204
    %v676 = vunpack.c.l.b16 %v205
    %v677 = vunpack.c.l.b16 %v206
    %v678 = vunpack.c.l.b16 %v207
    %v679 = vunpack.c.l.b16 %v208
    %v680 = vunpack.c.l.b16 %v209
    %v681 = vunpack.c.l.b16 %v210
    %v682 = vunpack.c.l.b16 %v211
    %v683 = vunpack.c.l.b16 %v212
    %v684 = vunpack.c.l.b16 %v213
    %v685 = vunpack.c.l.b16 %v214
    %v686 = vunpack.c.l.b16 %v215
    %v687 = vunpack.c.l.b16 %v216
    %v688 = vunpack.c.l.b16 %v217
    %v689 = vunpack.c.l.b16 %v218
    %v690 = vunpack.c.l.b16 %v219
    %v691 = vunpack.c.l.b16 %v220
    %v692 = vunpack.c.l.b16 %v221
    %v693 = vunpack.c.l.b16 %v222
    %v694 = vunpack.c.l.b16 %v223
    %v695 = vunpack.c.l.b16 %v224
    %v696 = vunpack.c.l.b16 %v225
    %v697 = vunpack.c.l.b16 %v226
    %v698 = vunpack.c.l.b16 %v227
    %v699 = vunpack.c.l.b16 %v228
    %v700 = vunpack.c.l.b16 %v229
    %v701 = vunpack.c.l.b16 %v230
    %v702 = vunpack.c.l.b16 %v231
    %v703 = vunpack.c.l.b16 %v232
    %v704 = vunpack.c.l.b16 %v233
    %v705 = vunpack.c.l.b16 %v234
    %v706 = vunpack.c.l.b16 %v235
    %v707 = vunpack.c.l.b16 %v236
    %v708 = vpack.c.b16 %v517, %v516
    %v709 = vpack.c.b16 %v519, %v518
    %v710 = vpack.c.b16 %v521, %v520
    %v711 = vpack.c.b16 %v523, %v522
    %v712 = vpack.c.b16 %v525, %v524
    %v713 = vpack.c.b16 %v527, %v526
    %v714 = vpack.c.b16 %v529, %v528
    %v715 = vpack.c.b16 %v531, %v530
    %v716 = vpack.c.b16 %v533, %v532
    %v717 = vpack.c.b16 %v535, %v534
    %v718 = vpack.c.b16 %v537, %v536
    %v719 = vpack.c.b16 %v539, %v538
    %v720 = vpack.c.b16 %v541, %v540
    %v721 = vpack.c.b16 %v543, %v542
    %v722 = vpack.c.b16 %v545, %v544
    %v723 = vpack.c.b16 %v547, %v546
    %v724 = vpack.c.b16 %v549, %v548
    %v725 = vpack.c.b16 %v551, %v550
    %v726 = vpack.c.b16 %v553, %v552
    %v727 = vpack.c.b16 %v555, %v554
    %v728 = vpack.c.b16 %v557, %v556
    %v729 = vpack.c.b16 %v559, %v558
    %v730 = vpack.c.b16 %v561, %v560
    %v731 = vpack.c.b16 %v563, %v562
    %v732 = vpack.c.b16 %v565, %v564
    %v733 = vpack.c.b16 %v567, %v566
    %v734 = vpack.c.b16 %v569, %v568
    %v735 = vpack.c.b16 %v571, %v570
    %v736 = vpack.c.b16 %v573, %v572
    %v737 = vpack.c.b16 %v575, %v574
    %v738 = vpack.c.b16 %v577, %v576
    %v739 = vpack.c.b16 %v579, %v578
    %v740 = vpack.c.b16 %v581, %v580
    %v741 = vpack.c.b16 %v583, %v582
    %v742 = vpack.c.b16 %v585, %v584
    %v743 = vpack.c.b16 %v587, %v586
    %v744 = vpack.c.b16 %v589, %v588
    %v745 = vpack.c.b16 %v591, %v590
    %v746 = vpack.c.b16 %v593, %v592
    %v747 = vpack.c.b16 %v595, %v594
    %v748 = vpack.c.b16 %v597, %v596
    %v749 = vpack.c.b16 %v599, %v598
    %v750 = vpack.c.b16 %v601, %v600
    %v751 = vpack.c.b16 %v603, %v602
    %v752 = vpack.c.b16 %v605, %v604
    %v753 = vpack.c.b16 %v607, %v606
    %v754 = vpack.c.b16 %v609, %v608
    %v755 = vpack.c.b16 %v611, %v610
    %v756 = vpack.c.b16 %v613, %v612
    %v757 = vpack.c.b16 %v615, %v614
    %v758 = vpack.c.b16 %v617, %v616
    %v759 = vpack.c.b16 %v619, %v618
    %v760 = vpack.c.b16 %v621, %v620
    %v761 = vpack.c.b16 %v623, %v622
    %v762 = vpack.c.b16 %v625, %v624
    %v763 = vpack.c.b16 %v627, %v626
    %v764 = vpack.c.b16 %v629, %v628
    %v765 = vpack.c.b16 %v631, %v630
    %v766 = vpack.c.b16 %v633, %v632
    %v767 = vpack.c.b16 %v635, %v634
    %v768 = vpack.c.b16 %v637, %v636
    %v769 = vpack.c.b16 %v639, %v638
    %v770 = vpack.c.b16 %v641, %v640
    %v771 = vpack.c.b16 %v643, %v642
    %v772 = vpack.c.b16 %v645, %v644
    %v773 = vpack.c.b16 %v647, %v646
    %v774 = vpack.c.b16 %v649, %v648
    %v775 = vpack.c.b16 %v651, %v650
    %v776 = vpack.c.b16 %v653, %v652
    %v777 = vpack.c.b16 %v655, %v654
    %v778 = vpack.c.b16 %v657, %v656
    %v779 = vpack.c.b16 %v659, %v658
    %v780 = vpack.c.b16 %v661, %v660
    %v781 = vpack.c.b16 %v663, %v662
    %v782 = vpack.c.b16 %v665, %v664
    %v783 = vpack.c.b16 %v667, %v666
    %v784 = vpack.c.b16 %v669, %v668
    %v785 = vpack.c.b16 %v671, %v670
    %v786 = vpack.c.b16 %v673, %v672
    %v787 = vpack.c.b16 %v675, %v674
    %v788 = vpack.c.b16 %v677, %v676
    %v789 = vpack.c.b16 %v679, %v678
    %v790 = vpack.c.b16 %v681, %v680
    %v791 = vpack.c.b16 %v683, %v682
    %v792 = vpack.c.b16 %v685, %v684
    %v793 = vpack.c.b16 %v687, %v686
    %v794 = vpack.c.b16 %v689, %v688
    %v795 = vpack.c.b16 %v691, %v690
    %v796 = vpack.c.b16 %v693, %v692
    %v797 = vpack.c.b16 %v695, %v694
    %v798 = vpack.c.b16 %v697, %v696
    %v799 = vpack.c.b16 %v699, %v698
    %v800 = vpack.c.b16 %v701, %v700
    %v801 = vpack.c.b16 %v703, %v702
    %v802 = vpack.c.b16 %v705, %v704
    %v803 = vpack.c.b16 %v707, %v706
    %900 = vmatprep.subr.bf16.mxu0 0
    %901 = vmatpush1.bf16.msra.mxu0 %v715
    %902 = vmatprep.subr.bf16.mxu0 0
    %903 = vmatpush1.bf16.msra.mxu0 %v714
    %904 = vmatprep.subr.bf16.mxu0 0
    %905 = vmatpush1.bf16.msra.mxu0 %v713
    %906 = vmatprep.subr.bf16.mxu0 0
    %907 = vmatpush1.bf16.msra.mxu0 %v712
    %908 = vmatprep.subr.bf16.mxu0 0
    %909 = vmatpush1.bf16.msra.mxu0 %v711
    %910 = vmatprep.subr.bf16.mxu0 0
    %911 = vmatpush1.bf16.msra.mxu0 %v710
    %912 = vmatprep.subr.bf16.mxu0 0
    %913 = vmatpush1.bf16.msra.mxu0 %v709
    %914 = vmatprep.subr.bf16.mxu0 0
    %915 = vmatpush1.bf16.msra.mxu0 %v708
    %916 = vmatprep.subr.bf16.mxu0 0
    %917 = vmatpush2.bf16.msra.mxu0 %v723
    %918 = vmatprep.subr.bf16.mxu0 0
    %919 = vmatpush2.bf16.msra.mxu0 %v722
    %920 = vmatprep.subr.bf16.mxu0 0
    %921 = vmatpush2.bf16.msra.mxu0 %v721
    %922 = vmatprep.subr.bf16.mxu0 0
    %923 = vmatpush2.bf16.msra.mxu0 %v720
    %924 = vmatprep.subr.bf16.mxu0 0
    %925 = vmatpush2.bf16.msra.mxu0 %v719
    %926 = vmatprep.subr.bf16.mxu0 0
    %927 = vmatpush2.bf16.msra.mxu0 %v718
    %928 = vmatprep.subr.bf16.mxu0 0
    %929 = vmatpush2.bf16.msra.mxu0 %v717
    %930 = vmatprep.subr.bf16.mxu0 0
    %931 = vmatpush2.bf16.msra.mxu0 %v716
    %932 = vmatprep.mubr.bf16.mxu0 %v276
    %933 = vmatmul.mubr.bf16.gmra.mxu0 %v262
    %v934 = vpop.f32.mrf.mxu0
    %v935 = vadd.f32 0.0, %v934
    %v936 = vpop.f32.mrf.mxu0
    %v937 = vpop.f32.mrf.mxu0
    %v938 = vpop.f32.mrf.mxu0
    %939 = vdwg.mxu0
    %940 = vmatprep.subr.bf16.mxu0 0
    %941 = vmatpush1.bf16.msra.mxu0 %v731
    %942 = vmatprep.subr.bf16.mxu0 0
    %943 = vmatpush1.bf16.msra.mxu0 %v730
    %944 = vmatprep.subr.bf16.mxu0 0
    %945 = vmatpush1.bf16.msra.mxu0 %v729
    %946 = vmatprep.subr.bf16.mxu0 0
    %947 = vmatpush1.bf16.msra.mxu0 %v728
    %948 = vmatprep.subr.bf16.mxu0 0
    %949 = vmatpush1.bf16.msra.mxu0 %v727
    %950 = vmatprep.subr.bf16.mxu0 0
    %951 = vmatpush1.bf16.msra.mxu0 %v726
    %952 = vmatprep.subr.bf16.mxu0 0
    %953 = vmatpush1.bf16.msra.mxu0 %v725
    %954 = vmatprep.subr.bf16.mxu0 0
    %955 = vmatpush1.bf16.msra.mxu0 %v724
    %956 = vmatprep.subr.bf16.mxu0 0
    %957 = vmatpush2.bf16.msra.mxu0 %v739
    %958 = vmatprep.subr.bf16.mxu0 0
    %959 = vmatpush2.bf16.msra.mxu0 %v738
    %960 = vmatprep.subr.bf16.mxu0 0
    %961 = vmatpush2.bf16.msra.mxu0 %v737
    %962 = vmatprep.subr.bf16.mxu0 0
    %963 = vmatpush2.bf16.msra.mxu0 %v736
    %964 = vmatprep.subr.bf16.mxu0 0
    %965 = vmatpush2.bf16.msra.mxu0 %v735
    %966 = vmatprep.subr.bf16.mxu0 0
    %967 = vmatpush2.bf16.msra.mxu0 %v734
    %968 = vmatprep.subr.bf16.mxu0 0
    %969 = vmatpush2.bf16.msra.mxu0 %v733
    %970 = vmatprep.subr.bf16.mxu0 0
    %971 = vmatpush2.bf16.msra.mxu0 %v732
    %972 = vmatprep.mubr.bf16.mxu0 %v286
    %973 = vmatmul.mubr.bf16.gmra.mxu0 %v284
    %v974 = vpop.f32.mrf.mxu0
    %v975 = vadd.f32 %v935, %v974
    %v976 = vpop.f32.mrf.mxu0
    %v977 = vpop.f32.mrf.mxu0
    %v978 = vpop.f32.mrf.mxu0
    %979 = vdwg.mxu0
    %980 = vmatprep.subr.bf16.mxu0 0
    %981 = vmatpush1.bf16.msra.mxu0 %v747
    %982 = vmatprep.subr.bf16.mxu0 0
    %983 = vmatpush1.bf16.msra.mxu0 %v746
    %984 = vmatprep.subr.bf16.mxu0 0
    %985 = vmatpush1.bf16.msra.mxu0 %v745
    %986 = vmatprep.subr.bf16.mxu0 0
    %987 = vmatpush1.bf16.msra.mxu0 %v744
    %988 = vmatprep.subr.bf16.mxu0 0
    %989 = vmatpush1.bf16.msra.mxu0 %v743
    %990 = vmatprep.subr.bf16.mxu0 0
    %991 = vmatpush1.bf16.msra.mxu0 %v742
    %992 = vmatprep.subr.bf16.mxu0 0
    %993 = vmatpush1.bf16.msra.mxu0 %v741
    %994 = vmatprep.subr.bf16.mxu0 0
    %995 = vmatpush1.bf16.msra.mxu0 %v740
    %996 = vmatprep.subr.bf16.mxu0 0
    %997 = vmatpush2.bf16.msra.mxu0 %v755
    %998 = vmatprep.subr.bf16.mxu0 0
    %999 = vmatpush2.bf16.msra.mxu0 %v754
    %1000 = vmatprep.subr.bf16.mxu0 0
    %1001 = vmatpush2.bf16.msra.mxu0 %v753
    %1002 = vmatprep.subr.bf16.mxu0 0
    %1003 = vmatpush2.bf16.msra.mxu0 %v752
    %1004 = vmatprep.subr.bf16.mxu0 0
    %1005 = vmatpush2.bf16.msra.mxu0 %v751
    %1006 = vmatprep.subr.bf16.mxu0 0
    %1007 = vmatpush2.bf16.msra.mxu0 %v750
    %1008 = vmatprep.subr.bf16.mxu0 0
    %1009 = vmatpush2.bf16.msra.mxu0 %v749
    %1010 = vmatprep.subr.bf16.mxu0 0
    %1011 = vmatpush2.bf16.msra.mxu0 %v748
    %1012 = vmatprep.mubr.bf16.mxu0 %v283
    %1013 = vmatmul.mubr.bf16.gmra.mxu0 %v269
    %v1014 = vpop.f32.mrf.mxu0
    %v1015 = vadd.f32 %v975, %v1014
    %v1016 = vpop.f32.mrf.mxu0
    %v1017 = vpop.f32.mrf.mxu0
    %v1018 = vpop.f32.mrf.mxu0
    %1019 = vdwg.mxu0
    %1020 = vmatprep.subr.bf16.mxu0 0
    %1021 = vmatpush1.bf16.msra.mxu0 %v763
    %1022 = vmatprep.subr.bf16.mxu0 0
    %1023 = vmatpush1.bf16.msra.mxu0 %v762
    %1024 = vmatprep.subr.bf16.mxu0 0
    %1025 = vmatpush1.bf16.msra.mxu0 %v761
    %1026 = vmatprep.subr.bf16.mxu0 0
    %1027 = vmatpush1.bf16.msra.mxu0 %v760
    %1028 = vmatprep.subr.bf16.mxu0 0
    %1029 = vmatpush1.bf16.msra.mxu0 %v759
    %1030 = vmatprep.subr.bf16.mxu0 0
    %1031 = vmatpush1.bf16.msra.mxu0 %v758
    %1032 = vmatprep.subr.bf16.mxu0 0
    %1033 = vmatpush1.bf16.msra.mxu0 %v757
    %1034 = vmatprep.subr.bf16.mxu0 0
    %1035 = vmatpush1.bf16.msra.mxu0 %v756
    %1036 = vmatprep.subr.bf16.mxu0 0
    %1037 = vmatpush2.bf16.msra.mxu0 %v771
    %1038 = vmatprep.subr.bf16.mxu0 0
    %1039 = vmatpush2.bf16.msra.mxu0 %v770
    %1040 = vmatprep.subr.bf16.mxu0 0
    %1041 = vmatpush2.bf16.msra.mxu0 %v769
    %1042 = vmatprep.subr.bf16.mxu0 0
    %1043 = vmatpush2.bf16.msra.mxu0 %v768
    %1044 = vmatprep.subr.bf16.mxu0 0
    %1045 = vmatpush2.bf16.msra.mxu0 %v767
    %1046 = vmatprep.subr.bf16.mxu0 0
    %1047 = vmatpush2.bf16.msra.mxu0 %v766
    %1048 = vmatprep.subr.bf16.mxu0 0
    %1049 = vmatpush2.bf16.msra.mxu0 %v765
    %1050 = vmatprep.subr.bf16.mxu0 0
    %1051 = vmatpush2.bf16.msra.mxu0 %v764
    %1052 = vmatprep.mubr.bf16.mxu0 %v287
    %1053 = vmatmul.mubr.bf16.gmra.mxu0 %v285
    %v1054 = vpop.f32.mrf.mxu0
    %v1055 = vadd.f32 %v1015, %v1054
    %v1056 = vpop.f32.mrf.mxu0
    %v1057 = vpop.f32.mrf.mxu0
    %v1058 = vpop.f32.mrf.mxu0
    %1059 = vdwg.mxu0
    %1060 = vmatprep.subr.bf16.mxu0 0
    %1061 = vmatpush1.bf16.msra.mxu0 %v779
    %1062 = vmatprep.subr.bf16.mxu0 0
    %1063 = vmatpush1.bf16.msra.mxu0 %v778
    %1064 = vmatprep.subr.bf16.mxu0 0
    %1065 = vmatpush1.bf16.msra.mxu0 %v777
    %1066 = vmatprep.subr.bf16.mxu0 0
    %1067 = vmatpush1.bf16.msra.mxu0 %v776
    %1068 = vmatprep.subr.bf16.mxu0 0
    %1069 = vmatpush1.bf16.msra.mxu0 %v775
    %1070 = vmatprep.subr.bf16.mxu0 0
    %1071 = vmatpush1.bf16.msra.mxu0 %v774
    %1072 = vmatprep.subr.bf16.mxu0 0
    %1073 = vmatpush1.bf16.msra.mxu0 %v773
    %1074 = vmatprep.subr.bf16.mxu0 0
    %1075 = vmatpush1.bf16.msra.mxu0 %v772
    %1076 = vmatprep.subr.bf16.mxu0 0
    %1077 = vmatpush2.bf16.msra.mxu0 %v787
    %1078 = vmatprep.subr.bf16.mxu0 0
    %1079 = vmatpush2.bf16.msra.mxu0 %v786
    %1080 = vmatprep.subr.bf16.mxu0 0
    %1081 = vmatpush2.bf16.msra.mxu0 %v785
    %1082 = vmatprep.subr.bf16.mxu0 0
    %1083 = vmatpush2.bf16.msra.mxu0 %v784
    %1084 = vmatprep.subr.bf16.mxu0 0
    %1085 = vmatpush2.bf16.msra.mxu0 %v783
    %1086 = vmatprep.subr.bf16.mxu0 0
    %1087 = vmatpush2.bf16.msra.mxu0 %v782
    %1088 = vmatprep.subr.bf16.mxu0 0
    %1089 = vmatpush2.bf16.msra.mxu0 %v781
    %1090 = vmatprep.subr.bf16.mxu0 0
    %1091 = vmatpush2.bf16.msra.mxu0 %v780
    %1092 = vmatprep.mubr.bf16.mxu0 %v309
    %1093 = vmatmul.mubr.bf16.gmra.mxu0 %v302
    %v1094 = vpop.f32.mrf.mxu0
    %v1095 = vadd.f32 %v1055, %v1094
    %v1096 = vpop.f32.mrf.mxu0
    %v1097 = vpop.f32.mrf.mxu0
    %v1098 = vpop.f32.mrf.mxu0
    %1099 = vdwg.mxu0
    %1100 = vmatprep.subr.bf16.mxu0 0
    %1101 = vmatpush1.bf16.msra.mxu0 %v795
    %1102 = vmatprep.subr.bf16.mxu0 0
    %1103 = vmatpush1.bf16.msra.mxu0 %v794
    %1104 = vmatprep.subr.bf16.mxu0 0
    %1105 = vmatpush1.bf16.msra.mxu0 %v793
    %1106 = vmatprep.subr.bf16.mxu0 0
    %1107 = vmatpush1.bf16.msra.mxu0 %v792
    %1108 = vmatprep.subr.bf16.mxu0 0
    %1109 = vmatpush1.bf16.msra.mxu0 %v791
    %1110 = vmatprep.subr.bf16.mxu0 0
    %1111 = vmatpush1.bf16.msra.mxu0 %v790
    %1112 = vmatprep.subr.bf16.mxu0 0
    %1113 = vmatpush1.bf16.msra.mxu0 %v789
    %1114 = vmatprep.subr.bf16.mxu0 0
    %1115 = vmatpush1.bf16.msra.mxu0 %v788
    %1116 = vmatprep.subr.bf16.mxu0 0
    %1117 = vmatpush2.bf16.msra.mxu0 %v803
    %1118 = vmatprep.subr.bf16.mxu0 0
    %1119 = vmatpush2.bf16.msra.mxu0 %v802
    %1120 = vmatprep.subr.bf16.mxu0 0
    %1121 = vmatpush2.bf16.msra.mxu0 %v801
    %1122 = vmatprep.subr.bf16.mxu0 0
    %1123 = vmatpush2.bf16.msra.mxu0 %v800
    %1124 = vmatprep.subr.bf16.mxu0 0
    %1125 = vmatpush2.bf16.msra.mxu0 %v799
    %1126 = vmatprep.subr.bf16.mxu0 0
    %1127 = vmatpush2.bf16.msra.mxu0 %v798
    %1128 = vmatprep.subr.bf16.mxu0 0
    %1129 = vmatpush2.bf16.msra.mxu0 %v797
    %1130 = vmatprep.subr.bf16.mxu0 0
    %1131 = vmatpush2.bf16.msra.mxu0 %v796
    %1132 = vmatprep.mubr.bf16.mxu0 %v311
    %1133 = vmatmul.mubr.bf16.gmra.mxu0 %v310
    %v1134 = vpop.f32.mrf.mxu0
    %v1135 = vadd.f32 %v1095, %v1134
    %v1136 = vpop.f32.mrf.mxu0
    %v1137 = vpop.f32.mrf.mxu0
    %v1138 = vpop.f32.mrf.mxu0
    %1139 = vdwg.mxu0
    %v1140 = vadd.f32 %v42, %v1135
    %1141 = vst [vmem:[#allocation2] sm:$0x3] %v1140
    // Predicated region
    $region42: #{netwrapper_forward.1} parent=1 // pred_check
      %p1142 = pneg %p37
    $region43: #{netwrapper_forward.1} parent=1 // pred_check_branch
      %1144 = sbr.rel (%p1142) target = $region45
    $region44: #{netwrapper_forward.1} parent=1 // pred_region
      %v1145 = vld [vmem:[#allocation2] sm:$0x3]
      %v1146 = vld [vmem:[%s2] sm:$0x1]
      %v1148 = vlaneseq
      %v1149 = vshrl.u32 %v1148, 7
      %v1150 = vsub.s32 0, %v1149
      %v1151 = vrot.slane %v1146, %v1150
      %v1153 = vadd.f32 %v1145, %v1151
      %v1154 = vmax.f32 %v1153, 0.0
      %1155 = vst [vmem:[#allocation5] sm:$0x3] %v1154
      %v1156 = vpack.c.bf16 %v1154, %v1154
      %v1157 = vld [vmem:[%s3] sm:$0xff]
      %v1158 = vld [vmem:[%s3 + $0x8] sm:$0xff]
      %v1159 = vld [vmem:[%s3 + $0x10] sm:$0xff]
      %v1160 = vld [vmem:[%s3 + $0x18] sm:$0xff]
      %v1161 = vld [vmem:[%s3 + $0x20] sm:$0xff]
      %v1162 = vld [vmem:[%s3 + $0x28] sm:$0xff]
      %v1163 = vld [vmem:[%s3 + $0x30] sm:$0xff]
      %v1164 = vld [vmem:[%s3 + $0x38] sm:$0xff]
      %v1165 = vld [vmem:[%s3 + $0x40] sm:$0xff]
      %v1166 = vld [vmem:[%s3 + $0x48] sm:$0xff]
      %v1167 = vld [vmem:[%s3 + $0x50] sm:$0xff]
      %v1168 = vld [vmem:[%s3 + $0x58] sm:$0xff]
      %v1169 = vld [vmem:[%s3 + $0x60] sm:$0xff]
      %v1170 = vld [vmem:[%s3 + $0x68] sm:$0xff]
      %v1171 = vld [vmem:[%s3 + $0x70] sm:$0xff]
      %v1172 = vld [vmem:[%s3 + $0x78] sm:$0xff]
      %v1173 = vld [vmem:[%s4] sm:$0x3]
      %v1175 = vlaneseq
      %v1176 = vshrl.u32 %v1175, 7
      %v1177 = vsub.s32 0, %v1176
      %v1178 = vrot.slane %v1173, %v1177
      %v1179 = vlaneseq
      %v1180 = vshrl.u32 %v1179, 7
      %v1181 = vsub.s32 1, %v1180
      %v1182 = vrot.slane %v1173, %v1181
      %v1201 = vunpack.c.l.b16 %v1157
      %v1202 = vunpack.c.h.b16 %v1157
      %v1203 = vunpack.c.l.b16 %v1158
      %v1204 = vunpack.c.h.b16 %v1158
      %v1205 = vunpack.c.l.b16 %v1159
      %v1206 = vunpack.c.h.b16 %v1159
      %v1207 = vunpack.c.l.b16 %v1160
      %v1208 = vunpack.c.h.b16 %v1160
      %v1209 = vunpack.c.l.b16 %v1161
      %v1210 = vunpack.c.h.b16 %v1161
      %v1211 = vunpack.c.l.b16 %v1162
      %v1212 = vunpack.c.h.b16 %v1162
      %v1213 = vunpack.c.l.b16 %v1163
      %v1214 = vunpack.c.h.b16 %v1163
      %v1215 = vunpack.c.l.b16 %v1164
      %v1216 = vunpack.c.h.b16 %v1164
      %v1217 = vunpack.c.l.b16 %v1165
      %v1218 = vunpack.c.h.b16 %v1165
      %v1219 = vunpack.c.l.b16 %v1166
      %v1220 = vunpack.c.h.b16 %v1166
      %v1221 = vunpack.c.l.b16 %v1167
      %v1222 = vunpack.c.h.b16 %v1167
      %v1223 = vunpack.c.l.b16 %v1168
      %v1224 = vunpack.c.h.b16 %v1168
      %v1225 = vunpack.c.l.b16 %v1169
      %v1226 = vunpack.c.h.b16 %v1169
      %v1227 = vunpack.c.l.b16 %v1170
      %v1228 = vunpack.c.h.b16 %v1170
      %v1229 = vunpack.c.l.b16 %v1171
      %v1230 = vunpack.c.h.b16 %v1171
      %v1231 = vunpack.c.l.b16 %v1172
      %v1232 = vunpack.c.h.b16 %v1172
      %v1233 = vpack.c.b16 %v1203, %v1201
      %v1234 = vpack.c.b16 %v1204, %v1202
      %v1235 = vpack.c.b16 %v1207, %v1205
      %v1236 = vpack.c.b16 %v1208, %v1206
      %v1237 = vpack.c.b16 %v1211, %v1209
      %v1238 = vpack.c.b16 %v1212, %v1210
      %v1239 = vpack.c.b16 %v1215, %v1213
      %v1240 = vpack.c.b16 %v1216, %v1214
      %v1241 = vpack.c.b16 %v1219, %v1217
      %v1242 = vpack.c.b16 %v1220, %v1218
      %v1243 = vpack.c.b16 %v1223, %v1221
      %v1244 = vpack.c.b16 %v1224, %v1222
      %v1245 = vpack.c.b16 %v1227, %v1225
      %v1246 = vpack.c.b16 %v1228, %v1226
      %v1247 = vpack.c.b16 %v1231, %v1229
      %v1248 = vpack.c.b16 %v1232, %v1230
      %1265 = vmatprep.subr.bf16.mxu0 %v1248
      %1266 = vmatpush1.bf16.msra.mxu0 %v1247
      %1267 = vmatprep.subr.bf16.mxu0 %v1246
      %1268 = vmatpush1.bf16.msra.mxu0 %v1245
      %1269 = vmatprep.subr.bf16.mxu0 %v1244
      %1270 = vmatpush1.bf16.msra.mxu0 %v1243
      %1271 = vmatprep.subr.bf16.mxu0 %v1242
      %1272 = vmatpush1.bf16.msra.mxu0 %v1241
      %1273 = vmatprep.subr.bf16.mxu0 %v1240
      %1274 = vmatpush1.bf16.msra.mxu0 %v1239
      %1275 = vmatprep.subr.bf16.mxu0 %v1238
      %1276 = vmatpush1.bf16.msra.mxu0 %v1237
      %1277 = vmatprep.subr.bf16.mxu0 %v1236
      %1278 = vmatpush1.bf16.msra.mxu0 %v1235
      %1279 = vmatprep.subr.bf16.mxu0 %v1234
      %1280 = vmatpush1.bf16.msra.mxu0 %v1233
      %1281 = vmatprep.subr.bf16.mxu0 0
      %1282 = vmatpush2.bf16.msra.mxu0 0
      %1283 = vmatprep.subr.bf16.mxu0 0
      %1284 = vmatpush2.bf16.msra.mxu0 0
      %1285 = vmatprep.subr.bf16.mxu0 0
      %1286 = vmatpush2.bf16.msra.mxu0 0
      %1287 = vmatprep.subr.bf16.mxu0 0
      %1288 = vmatpush2.bf16.msra.mxu0 0
      %1289 = vmatprep.subr.bf16.mxu0 0
      %1290 = vmatpush2.bf16.msra.mxu0 0
      %1291 = vmatprep.subr.bf16.mxu0 0
      %1292 = vmatpush2.bf16.msra.mxu0 0
      %1293 = vmatprep.subr.bf16.mxu0 0
      %1294 = vmatpush2.bf16.msra.mxu0 0
      %1295 = vmatprep.subr.bf16.mxu0 0
      %1296 = vmatpush2.bf16.msra.mxu0 0
      %1297 = vmatprep.mubr.bf16.mxu0 0
      %1298 = vmatmul.mubr.bf16.gmra.mxu0 %v1156
      %v1299 = vpop.f32.mrf.mxu0
      %v1300 = vadd.f32 %v1178, %v1299
      %v1301 = vpop.f32.mrf.mxu0
      %v1302 = vadd.f32 %v1182, %v1301
      %v1303 = vpop.f32.mrf.mxu0
      %v1304 = vpop.f32.mrf.mxu0
      %1305 = vdwg.mxu0
      %v1306 = vld [vmem:[%s5] sm:$0x3]
      %v1307 = vld [vmem:[%s6] sm:$0x3]
      %vm1308 = vcmask 1041408
      %v1309 = vsel %vm1308, %v1300, 0.0
      %v1310 = vrot.slane %v1309, 4
      %v1311 = vadd.f32 %v1309, %v1310
      %v1312 = vrot.slane %v1311, 2
      %v1313 = vadd.f32 %v1311, %v1312
      %v1314 = vrot.slane %v1313, 1
      %v1315 = vadd.f32 %v1313, %v1314
      %v1316 = vsel %vm1308, %v1302, 0.0
      %v1317 = vrot.slane %v1316, 4
      %v1318 = vadd.f32 %v1316, %v1317
      %v1319 = vrot.slane %v1318, 2
      %v1320 = vadd.f32 %v1318, %v1319
      %v1321 = vrot.slane %v1320, 1
      %v1322 = vadd.f32 %v1320, %v1321
      %v1323 = vrcp.pop 2.0
      %v1324 = vmul.f32 %v1315, %v1323
      %v1325 = vmul.f32 %v1322, %v1323
      %v1326 = vsub.f32 %v1300, %v1324
      %v1327 = vsub.f32 %v1302, %v1325
      %v1328 = vmul.f32 %v1326, %v1326
      %v1329 = vmul.f32 %v1327, %v1327
      %v1330 = vsel %vm1308, %v1328, 0.0
      %v1331 = vrot.slane %v1330, 4
      %v1332 = vadd.f32 %v1330, %v1331
      %v1333 = vrot.slane %v1332, 2
      %v1334 = vadd.f32 %v1332, %v1333
      %v1335 = vrot.slane %v1334, 1
      %v1336 = vadd.f32 %v1334, %v1335
      %v1337 = vsel %vm1308, %v1329, 0.0
      %v1338 = vrot.slane %v1337, 4
      %v1339 = vadd.f32 %v1337, %v1338
      %v1340 = vrot.slane %v1339, 2
      %v1341 = vadd.f32 %v1339, %v1340
      %v1342 = vrot.slane %v1341, 1
      %v1343 = vadd.f32 %v1341, %v1342
      %v1344 = vmul.f32 %v1336, %v1323
      %v1345 = vmul.f32 %v1343, %v1323
      %v1346 = vadd.f32 %v1344, 1e-05
      %v1347 = vadd.f32 %v1345, 1e-05
      %v1348 = vrsqrt.pop %v1346
      %v1349 = vrsqrt.pop %v1347
      %v1350 = vmul.f32 %v1326, %v1348
      %v1351 = vmul.f32 %v1327, %v1349
      %v1353 = vlaneseq
      %v1354 = vshrl.u32 %v1353, 7
      %v1355 = vsub.s32 0, %v1354
      %v1356 = vrot.slane %v1306, %v1355
      %v1357 = vlaneseq
      %v1358 = vshrl.u32 %v1357, 7
      %v1359 = vsub.s32 1, %v1358
      %v1360 = vrot.slane %v1306, %v1359
      %v1363 = vmul.f32 %v1350, %v1356
      %v1364 = vmul.f32 %v1351, %v1360
      %v1366 = vlaneseq
      %v1367 = vshrl.u32 %v1366, 7
      %v1368 = vsub.s32 0, %v1367
      %v1369 = vrot.slane %v1307, %v1368
      %v1370 = vlaneseq
      %v1371 = vshrl.u32 %v1370, 7
      %v1372 = vsub.s32 1, %v1371
      %v1373 = vrot.slane %v1307, %v1372
      %v1376 = vadd.f32 %v1363, %v1369
      %v1377 = vadd.f32 %v1364, %v1373
      %v1378 = vmax.f32 %v1376, 0.0
      %v1379 = vmax.f32 %v1377, 0.0
      %v1380 = vpack.c.bf16 %v1378, %v1378
      %v1381 = vpack.c.bf16 %v1379, %v1379
      %v1382 = vld [vmem:[%s7] sm:$0xf]
      %v1383 = vld [vmem:[%s7 + $0x4] sm:$0xf]
      %v1384 = vld [vmem:[%s7 + $0x8] sm:$0xf]
      %v1385 = vld [vmem:[%s7 + $0xc] sm:$0xf]
      %v1386 = vld [vmem:[%s7 + $0x10] sm:$0xf]
      %v1387 = vld [vmem:[%s7 + $0x14] sm:$0xf]
      %v1388 = vld [vmem:[%s7 + $0x18] sm:$0xf]
      %v1389 = vld [vmem:[%s7 + $0x1c] sm:$0xf]
      %v1390 = vld [vmem:[%s7 + $0x20] sm:$0xf]
      %v1391 = vld [vmem:[%s7 + $0x24] sm:$0xf]
      %v1392 = vld [vmem:[%s7 + $0x28] sm:$0xf]
      %v1393 = vld [vmem:[%s7 + $0x2c] sm:$0xf]
      %v1394 = vld [vmem:[%s7 + $0x30] sm:$0xf]
      %v1395 = vld [vmem:[%s7 + $0x34] sm:$0xf]
      %v1396 = vld [vmem:[%s7 + $0x38] sm:$0xf]
      %v1397 = vld [vmem:[%s7 + $0x3c] sm:$0xf]
      %v1398 = vld [vmem:[%s7 + $0x40] sm:$0xf]
      %v1399 = vld [vmem:[%s7 + $0x44] sm:$0xf]
      %v1400 = vld [vmem:[%s7 + $0x48] sm:$0xf]
      %v1401 = vld [vmem:[%s7 + $0x4c] sm:$0xf]
      %v1402 = vld [vmem:[%s7 + $0x50] sm:$0xf]
      %v1403 = vld [vmem:[%s7 + $0x54] sm:$0xf]
      %v1404 = vld [vmem:[%s7 + $0x58] sm:$0xf]
      %v1405 = vld [vmem:[%s7 + $0x5c] sm:$0xf]
      %v1406 = vld [vmem:[%s7 + $0x60] sm:$0xf]
      %v1407 = vld [vmem:[%s7 + $0x64] sm:$0xf]
      %v1408 = vld [vmem:[%s7 + $0x68] sm:$0xf]
      %v1409 = vld [vmem:[%s7 + $0x6c] sm:$0xf]
      %v1410 = vld [vmem:[%s7 + $0x70] sm:$0xf]
      %v1411 = vld [vmem:[%s7 + $0x74] sm:$0xf]
      %v1412 = vld [vmem:[%s7 + $0x78] sm:$0xf]
      %v1413 = vld [vmem:[%s7 + $0x7c] sm:$0xf]
      %v1414 = vld [vmem:[%s8] sm:$0x1]
      %v1416 = vlaneseq
      %v1417 = vshrl.u32 %v1416, 7
      %v1418 = vsub.s32 0, %v1417
      %v1419 = vrot.slane %v1414, %v1418
      %v1453 = vunpack.c.l.b16 %v1382
      %v1454 = vunpack.c.l.b16 %v1383
      %v1455 = vunpack.c.l.b16 %v1384
      %v1456 = vunpack.c.l.b16 %v1385
      %v1457 = vunpack.c.l.b16 %v1386
      %v1458 = vunpack.c.l.b16 %v1387
      %v1459 = vunpack.c.l.b16 %v1388
      %v1460 = vunpack.c.l.b16 %v1389
      %v1461 = vunpack.c.l.b16 %v1390
      %v1462 = vunpack.c.l.b16 %v1391
      %v1463 = vunpack.c.l.b16 %v1392
      %v1464 = vunpack.c.l.b16 %v1393
      %v1465 = vunpack.c.l.b16 %v1394
      %v1466 = vunpack.c.l.b16 %v1395
      %v1467 = vunpack.c.l.b16 %v1396
      %v1468 = vunpack.c.l.b16 %v1397
      %v1469 = vunpack.c.l.b16 %v1398
      %v1470 = vunpack.c.l.b16 %v1399
      %v1471 = vunpack.c.l.b16 %v1400
      %v1472 = vunpack.c.l.b16 %v1401
      %v1473 = vunpack.c.l.b16 %v1402
      %v1474 = vunpack.c.l.b16 %v1403
      %v1475 = vunpack.c.l.b16 %v1404
      %v1476 = vunpack.c.l.b16 %v1405
      %v1477 = vunpack.c.l.b16 %v1406
      %v1478 = vunpack.c.l.b16 %v1407
      %v1479 = vunpack.c.l.b16 %v1408
      %v1480 = vunpack.c.l.b16 %v1409
      %v1481 = vunpack.c.l.b16 %v1410
      %v1482 = vunpack.c.l.b16 %v1411
      %v1483 = vunpack.c.l.b16 %v1412
      %v1484 = vunpack.c.l.b16 %v1413
      %v1485 = vpack.c.b16 %v1454, %v1453
      %v1486 = vpack.c.b16 %v1456, %v1455
      %v1487 = vpack.c.b16 %v1458, %v1457
      %v1488 = vpack.c.b16 %v1460, %v1459
      %v1489 = vpack.c.b16 %v1462, %v1461
      %v1490 = vpack.c.b16 %v1464, %v1463
      %v1491 = vpack.c.b16 %v1466, %v1465
      %v1492 = vpack.c.b16 %v1468, %v1467
      %v1493 = vpack.c.b16 %v1470, %v1469
      %v1494 = vpack.c.b16 %v1472, %v1471
      %v1495 = vpack.c.b16 %v1474, %v1473
      %v1496 = vpack.c.b16 %v1476, %v1475
      %v1497 = vpack.c.b16 %v1478, %v1477
      %v1498 = vpack.c.b16 %v1480, %v1479
      %v1499 = vpack.c.b16 %v1482, %v1481
      %v1500 = vpack.c.b16 %v1484, %v1483
      %1517 = vmatprep.subr.bf16.mxu0 0
      %1518 = vmatpush1.bf16.msra.mxu0 %v1492
      %1519 = vmatprep.subr.bf16.mxu0 0
      %1520 = vmatpush1.bf16.msra.mxu0 %v1491
      %1521 = vmatprep.subr.bf16.mxu0 0
      %1522 = vmatpush1.bf16.msra.mxu0 %v1490
      %1523 = vmatprep.subr.bf16.mxu0 0
      %1524 = vmatpush1.bf16.msra.mxu0 %v1489
      %1525 = vmatprep.subr.bf16.mxu0 0
      %1526 = vmatpush1.bf16.msra.mxu0 %v1488
      %1527 = vmatprep.subr.bf16.mxu0 0
      %1528 = vmatpush1.bf16.msra.mxu0 %v1487
      %1529 = vmatprep.subr.bf16.mxu0 0
      %1530 = vmatpush1.bf16.msra.mxu0 %v1486
      %1531 = vmatprep.subr.bf16.mxu0 0
      %1532 = vmatpush1.bf16.msra.mxu0 %v1485
      %1533 = vmatprep.subr.bf16.mxu0 0
      %1534 = vmatpush2.bf16.msra.mxu0 %v1500
      %1535 = vmatprep.subr.bf16.mxu0 0
      %1536 = vmatpush2.bf16.msra.mxu0 %v1499
      %1537 = vmatprep.subr.bf16.mxu0 0
      %1538 = vmatpush2.bf16.msra.mxu0 %v1498
      %1539 = vmatprep.subr.bf16.mxu0 0
      %1540 = vmatpush2.bf16.msra.mxu0 %v1497
      %1541 = vmatprep.subr.bf16.mxu0 0
      %1542 = vmatpush2.bf16.msra.mxu0 %v1496
      %1543 = vmatprep.subr.bf16.mxu0 0
      %1544 = vmatpush2.bf16.msra.mxu0 %v1495
      %1545 = vmatprep.subr.bf16.mxu0 0
      %1546 = vmatpush2.bf16.msra.mxu0 %v1494
      %1547 = vmatprep.subr.bf16.mxu0 0
      %1548 = vmatpush2.bf16.msra.mxu0 %v1493
      %1549 = vmatprep.mubr.bf16.mxu0 %v1381
      %1550 = vmatmul.mubr.bf16.gmra.mxu0 %v1380
      %v1551 = vpop.f32.mrf.mxu0
      %v1552 = vadd.f32 %v1419, %v1551
      %v1553 = vpop.f32.mrf.mxu0
      %v1554 = vpop.f32.mrf.mxu0
      %v1555 = vpop.f32.mrf.mxu0
      %1556 = vdwg.mxu0
      %1557 = vst [vmem:[#allocation3] sm:$0x3] %v1552
    $region45: #{netwrapper_forward.1} parent=1 // pred_fallthru
      _
    // Predicated region
    $region46: #{netwrapper_forward.1} parent=1 // pred_check
      _
    $region47: #{netwrapper_forward.1} parent=1 // pred_check_branch
      %1559 = sbr.rel (0) target = $region49
    $region48: #{netwrapper_forward.1} parent=1 // pred_region
      %s1561 = ssub.s32 32, 32
      %1562 = vsyncadd [#allocation4], %s1561
      %s1564 = sshll.u32 [#allocation3], 4
      %s1565 = int_to_ptr.vmem [resolvable:$true] %s1564
      %1567 = dma.vmem_to_hbm [thread:$0]  %s1565, 32, %s9, [#allocation4]
    $region49: #{netwrapper_forward.1} parent=1 // pred_fallthru
      _
    // Predicated region
    $region50: #{netwrapper_forward.1} parent=1 // pred_check
      _
    $region51: #{netwrapper_forward.1} parent=1 // pred_check_branch
      %1569 = sbr.rel (0) target = $region53
    $region52: #{netwrapper_forward.1} parent=1 // pred_region
      %s1571 = ssub.s32 32, 32
      %1572 = vsyncadd [#allocation6], %s1571
      %s1574 = sshll.u32 [#allocation5], 4
      %s1575 = int_to_ptr.vmem [resolvable:$true] %s1574
      %1577 = dma.vmem_to_hbm [thread:$0]  %s1575, 32, %s10, [#allocation6]
    $region53: #{netwrapper_forward.1} parent=1 // pred_fallthru
      _
    // Predicated region
    $region54: #{netwrapper_forward.1} parent=1 // pred_check
      _
    $region55: #{netwrapper_forward.1} parent=1 // pred_check_branch
      %1579 = sbr.rel (0) target = $region57
    $region56: #{netwrapper_forward.1} parent=1 // pred_region
      %1580 = dma.done [#allocation4], 32
    $region57: #{netwrapper_forward.1} parent=1 // pred_fallthru
      _
    // Predicated region
    $region58: #{netwrapper_forward.1} parent=1 // pred_check
      _
    $region59: #{netwrapper_forward.1} parent=1 // pred_check_branch
      %1582 = sbr.rel (0) target = $region61
    $region60: #{netwrapper_forward.1} parent=1 // pred_region
      %1583 = dma.done [#allocation6], 32
    $region61: #{netwrapper_forward.1} parent=1 // pred_fallthru
      _
    %1584 = vsyncpa [#allocation4], 1
    %1585 = vsyncpa [#allocation6], 1

</llo_original>
